<compile_context>
chip_gen: v5e
topology: v5e:2x2
jax: 0.10.0
libtpu: 0.0.40
codegen_flags: <defaults>
</compile_context>

<pallas_src>
import math

import jax
import jax.numpy as jnp
from jax.experimental import pallas as pl
from jax.experimental.pallas import tpu as pltpu

BN_EPS = 1e-5


def _fusion_kernel(post_ref, dct_ref, img0_ref, pr0_ref, ir0_ref,
                   wqk1_ref, bqk1_ref, wvo1_ref, bvo1_ref,
                   wqk2_ref, bqk2_ref, wvo2_ref, bvo2_ref,
                   wl_ref, bl_ref, out_ref):
    """Shapes inside the kernel (one batch-chunk of TB examples per grid step):
       post [TB,Sp,D], dct [TB,Sd,D], img0 [TB,D] (query row 0), pr0/ir0 [TB,1],
       wqk*/wvo*/wl [D,D] bf16 (folded), bqk*/bvo*/bl [1,D] f32 (folded),
       out [TB,D]."""
    f32 = jnp.float32
    bf16 = jnp.bfloat16

    post = post_ref[...].astype(f32)          # score / softmax math in f32
    dct = dct_ref[...].astype(f32)
    ratio = pr0_ref[...].astype(f32) * ir0_ref[...].astype(f32)    # (TB,1)

    def folded_single_query_attention(q_in, src, wqk, bqk, wvo, bvo):
        # Effective query in *source* space (Wq, Wk^T and 1/sqrt(D) pre-folded).
        r = jnp.dot(q_in.astype(bf16), wqk[...],
                    preferred_element_type=f32) + bqk[...]           # (TB,D)
        # Single-query scores: VPU multiply + XLU lane-reduce (no MXU fill/drain).
        s = jnp.sum(src * r[:, None, :], axis=-1, keepdims=True)    # (TB,S,1)
        m = jnp.max(s, axis=1, keepdims=True)
        p = jnp.exp(s - m)
        denom = jnp.sum(p, axis=1, keepdims=True)                   # (TB,1,1)
        # Attention-weighted source rows; V/out projections folded into wvo/bvo.
        a = jnp.sum(p * src, axis=1)                                # (TB,D)
        a = a * pl.reciprocal(denom[:, 0, :], approx=True)          # (TB,D)
        return jnp.dot(a.astype(bf16), wvo[...],
                       preferred_element_type=f32) + bvo[...]       # (TB,D)

    # Fushion_layer_1(image_align, post_align, post_align, post_modal_ratio), row 0.
    o1 = folded_single_query_attention(img0_ref[...], post,
                                       wqk1_ref, bqk1_ref, wvo1_ref, bvo1_ref)
    # Fushion_layer_2(feat1 * img_modal_ratio, dct_img, dct_img), row 0 (cls).
    o2 = folded_single_query_attention(o1 * ratio, dct,
                                       wqk2_ref, bqk2_ref, wvo2_ref, bvo2_ref)
    # Fushion_linear: Linear + BatchNorm1d(eval) + ReLU, BN folded into wl/bl.
    y = jnp.dot(o2.astype(bf16), wl_ref[...],
                preferred_element_type=f32) + bl_ref[...]
    out_ref[...] = jnp.maximum(y, 0.0).astype(out_ref.dtype)


def _prepare_params(params, D):
    """One-time constant folding outside the hot path (exact in f32):
       * scores need only r = (q Wq + bq) Wk^T / sqrt(D)   -> wqk, bqk
         (per-batch-constant bk contributions cancel in the softmax),
       * output path (p.src/sum p)(Wv Wo) + (bv Wo + bo)   -> wvo, bvo,
       * eval-mode BatchNorm folded into the final Linear  -> wl, bl.
       Weight matrices are stored in bf16 (MXU inputs); biases stay f32."""
    scale = 1.0 / math.sqrt(D)
    f32, bf16 = jnp.float32, jnp.bfloat16

    def fold_attention(w, b):             # w (4,D,D) = [Wq,Wk,Wv,Wo]; b (4,D)
        wq, wk, wv, wo = (w[i].astype(f32) for i in range(4))
        bq, bk, bv, bo = (b[i].astype(f32) for i in range(4))
        del bk  # constant over keys -> drops out of the softmax
        wqk = (scale * wq) @ wk.T
        bqk = ((scale * bq) @ wk.T)[None, :]
        wvo = wv @ wo
        bvo = (bv @ wo + bo)[None, :]
        return wqk.astype(bf16), bqk, wvo.astype(bf16), bvo

    wqk1, bqk1, wvo1, bvo1 = fold_attention(params["w1"], params["b1"])
    wqk2, bqk2, wvo2, bvo2 = fold_attention(params["w2"], params["b2"])

    gamma, beta, mean, var = (v.astype(f32) for v in params["bn"])
    inv = gamma * jax.lax.rsqrt(var + BN_EPS)
    wl = (params["wl"].astype(f32) * inv[None, :]).astype(bf16)
    bl = ((params["bl"].reshape(-1).astype(f32) - mean) * inv + beta)[None, :]
    return dict(wqk1=wqk1, bqk1=bqk1, wvo1=wvo1, bvo1=bvo1,
                wqk2=wqk2, bqk2=bqk2, wvo2=wvo2, bvo2=bvo2, wl=wl, bl=bl)


def _auto_batch_chunks(batch):
    """2 batch chunks (one per TensorCore) only on dual-TC chips (v4/v5p/v7x:
       device_kind e.g. 'TPU v4', 'TPU v5p', 'TPU7x'), and only when each core
       keeps a sublane-full M (>= 8 rows, multiple of 8).  Otherwise the whole
       batch runs in a single grid step (no per-step / sync overhead)."""
    half = batch // 2
    if batch % 2 == 0 and half >= 8 and half % 8 == 0:
        try:
            kind = jax.devices()[0].device_kind.lower()
        except Exception:  # pragma: no cover - multi-host / AOT fallback
            return 1
        if ("v4" in kind) or ("v5p" in kind) or ("7x" in kind) or ("v7" in kind):
            return 2
    return 1


def _const_spec(shape, single_buffer=True):
    """BlockSpec for a grid-invariant parameter (block 0 on every step).
       Single-buffered when supported: double-buffering a constant just doubles
       its VMEM footprint for zero pipelining benefit."""
    index_map = lambda c: (0,) * len(shape)
    if single_buffer:
        try:
            return pl.BlockSpec(shape, index_map, pipeline_mode=pl.Buffered(1))
        except (TypeError, AttributeError):  # pragma: no cover - older jax
            pass
    return pl.BlockSpec(shape, index_map)


def modal_fusion_forward(post_align, image_align, dct_img,
                         post_modal_ratio, img_modal_ratio, params,
                         *, batch_chunks=None):
    B, Sp, D = post_align.shape
    _, Sd, _ = dct_img.shape

    if batch_chunks is None:
        batch_chunks = _auto_batch_chunks(B)
    assert B % batch_chunks == 0
    TB = B // batch_chunks

    pp = _prepare_params(params, D)

    # Only query row 0 of image_align (the cls position) reaches the output, so
    # slice the query-side inputs to row 0 in the wrapper (free layout plumbing).
    # Activations keep their native dtype — no wrapper-side f32 up-casts.
    img0 = image_align[:, 0, :]
    pr0 = post_modal_ratio[:, 0:1]
    ir0 = img_modal_ratio[:, 0:1]

    # Explicit scoped-VMEM budget from the actual buffers (v5e default scoped
    # limit is only 16 MiB; cap at v7x's 64 MiB per-TensorCore VMEM).
    act_elems = TB * Sp * D + TB * Sd * D + 2 * (TB * D) + 2 * TB
    act_bytes = act_elems * jnp.dtype(post_align.dtype).itemsize
    w_bytes = sum(int(v.size) * jnp.dtype(v.dtype).itemsize for v in pp.values())
    vmem_limit = int(min(max(2 * act_bytes + 2 * w_bytes + (4 << 20), 16 << 20),
                         64 << 20))

    def build(single_buffer_consts):
        cspec = lambda shape: _const_spec(shape, single_buffer_consts)
        return pl.pallas_call(
            _fusion_kernel,
            out_shape=jax.ShapeDtypeStruct((B, D), post_align.dtype),
            grid=(batch_chunks,),
            in_specs=[
                pl.BlockSpec((TB, Sp, D), lambda c: (c, 0, 0)),   # post_align
                pl.BlockSpec((TB, Sd, D), lambda c: (c, 0, 0)),   # dct_img
                pl.BlockSpec((TB, D), lambda c: (c, 0)),          # image_align row 0
                pl.BlockSpec((TB, 1), lambda c: (c, 0)),          # post ratio row 0
                pl.BlockSpec((TB, 1), lambda c: (c, 0)),          # img ratio row 0
                cspec((D, D)), cspec((1, D)),                     # layer-1 wqk / bqk
                cspec((D, D)), cspec((1, D)),                     # layer-1 wvo / bvo
                cspec((D, D)), cspec((1, D)),                     # layer-2 wqk / bqk
                cspec((D, D)), cspec((1, D)),                     # layer-2 wvo / bvo
                cspec((D, D)), cspec((1, D)),                     # linear + BN folded
            ],
            out_specs=pl.BlockSpec((TB, D), lambda c: (c, 0)),
            compiler_params=pltpu.CompilerParams(
                dimension_semantics=("parallel",),
                vmem_limit_bytes=vmem_limit),
        )

    args = (post_align, dct_img, img0, pr0, ir0,
            pp["wqk1"], pp["bqk1"], pp["wvo1"], pp["bvo1"],
            pp["wqk2"], pp["bqk2"], pp["wvo2"], pp["bvo2"],
            pp["wl"], pp["bl"])
    try:
        return build(True)(*args)
    except Exception:  # pragma: no cover - jax without Buffered(1) support
        return build(False)(*args)


def reference_forward(post, img, dct, pr, ir, params):
    """Pure-JAX f32 reference with the module's original (unfolded) structure."""
    D = post.shape[-1]

    def attention(q_in, k_in, v_in, w, b):
        q = q_in @ w[0] + b[0]
        k = k_in @ w[1] + b[1]
        v = v_in @ w[2] + b[2]
        s = jnp.einsum('bqd,bkd->bqk', q, k) / math.sqrt(D)
        a = jax.nn.softmax(s, axis=-1)
        ctx = jnp.einsum('bqk,bkd->bqd', a, v)
        return ctx @ w[3] + b[3]

    feat1 = attention(img, post, post, params["w1"], params["b1"]) * pr[..., None]
    feat2 = attention(feat1 * ir[..., None], dct, dct, params["w2"], params["b2"])
    cls = feat2[:, 0]
    y = cls @ params["wl"] + params["bl"][0]
    gamma, beta, mean, var = params["bn"]
    y = (y - mean) * jax.lax.rsqrt(var + BN_EPS) * gamma + beta
    return jnp.maximum(y, 0.0)


if __name__ == "__main__":
    B, Sp, Si, Sd, D = 2, 8, 8, 8, 32   # align_dim == model_dim == 32

    key = jax.random.PRNGKey(0)
    keys = jax.random.split(key, 13)

    post_align = jax.random.normal(keys[0], (B, Sp, D), jnp.float32)
    image_align = jax.random.normal(keys[1], (B, Si, D), jnp.float32)
    dct_img = jax.random.normal(keys[2], (B, Sd, D), jnp.float32)
    post_modal_ratio = jax.random.uniform(keys[3], (B, Si), jnp.float32, 0.5, 1.0)
    img_modal_ratio = jax.random.uniform(keys[4], (B, Si), jnp.float32, 0.5, 1.0)

    def init_mha(k):
        ks = jax.random.split(k, 5)
        w = jnp.stack([jax.random.normal(ks[i], (D, D), jnp.float32) / math.sqrt(D)
                       for i in range(4)])
        b = jax.random.normal(ks[4], (4, D), jnp.float32) * 0.1
        return w, b

    w1, b1 = init_mha(keys[5])
    w2, b2 = init_mha(keys[6])
    wl = jax.random.normal(keys[7], (D, D), jnp.float32) / math.sqrt(D)
    bl = jax.random.normal(keys[8], (1, D), jnp.float32) * 0.1
    bn = jnp.stack([
        jax.random.uniform(keys[9], (D,), jnp.float32, 0.5, 1.5),    # gamma
        jax.random.normal(keys[10], (D,), jnp.float32) * 0.1,        # beta
        jax.random.normal(keys[11], (D,), jnp.float32) * 0.1,        # running_mean
        jax.random.uniform(keys[12], (D,), jnp.float32, 0.5, 1.5),   # running_var
    ])
    params = dict(w1=w1, b1=b1, w2=w2, b2=b2, wl=wl, bl=bl, bn=bn)

    out = modal_fusion_forward(post_align, image_align, dct_img,
                               post_modal_ratio, img_modal_ratio, params)
    out = jax.block_until_ready(out)

    ref = reference_forward(post_align, image_align, dct_img,
                            post_modal_ratio, img_modal_ratio, params)
    assert out.shape == (B, D), out.shape
    # Kernel feeds bf16 operands to the MXU (softmax math stays f32) and uses the
    # EUP approximate reciprocal, so compare against the f32 reference loosely;
    # any logic/folding bug would be off by O(1).
    assert jnp.allclose(out, ref, rtol=5e-2, atol=5e-2), \
        float(jnp.max(jnp.abs(out - ref)))
    print("KERNEL_OK")
</pallas_src>

<mosaic_0001>
module attributes {stable_mosaic.version = 11 : i64} {
  func.func @_fusion_kernel(%arg0: i32, %arg1: memref<2x8x32xf32, #tpu.memory_space<vmem>>, %arg2: memref<2x8x32xf32, #tpu.memory_space<vmem>>, %arg3: memref<2x32xf32, #tpu.memory_space<vmem>>, %arg4: memref<2x1xf32, #tpu.memory_space<vmem>>, %arg5: memref<2x1xf32, #tpu.memory_space<vmem>>, %arg6: memref<32x32xbf16, #tpu.memory_space<vmem>>, %arg7: memref<1x32xf32, #tpu.memory_space<vmem>>, %arg8: memref<32x32xbf16, #tpu.memory_space<vmem>>, %arg9: memref<1x32xf32, #tpu.memory_space<vmem>>, %arg10: memref<32x32xbf16, #tpu.memory_space<vmem>>, %arg11: memref<1x32xf32, #tpu.memory_space<vmem>>, %arg12: memref<32x32xbf16, #tpu.memory_space<vmem>>, %arg13: memref<1x32xf32, #tpu.memory_space<vmem>>, %arg14: memref<32x32xbf16, #tpu.memory_space<vmem>>, %arg15: memref<1x32xf32, #tpu.memory_space<vmem>>, %arg16: memref<2x32xf32, #tpu.memory_space<vmem>>) attributes {dimension_semantics = [#tpu.dimension_semantics<parallel>], iteration_bounds = array<i64: 1>, scalar_prefetch = 0 : i64, scratch_operands = 0 : i64, tpu.core_type = #tpu.core_type<tc>, window_params = [{transform_indices = @transform_0, window_bounds = array<i64: 2, 8, 32>}, {transform_indices = @transform_1, window_bounds = array<i64: 2, 8, 32>}, {transform_indices = @transform_2, window_bounds = array<i64: 2, 32>}, {transform_indices = @transform_3, window_bounds = array<i64: 2, 1>}, {transform_indices = @transform_4, window_bounds = array<i64: 2, 1>}, {pipeline_mode = #tpu.pipeline_mode<synchronous>, transform_indices = @transform_5, window_bounds = array<i64: 32, 32>}, {pipeline_mode = #tpu.pipeline_mode<synchronous>, transform_indices = @transform_6, window_bounds = array<i64: 1, 32>}, {pipeline_mode = #tpu.pipeline_mode<synchronous>, transform_indices = @transform_7, window_bounds = array<i64: 32, 32>}, {pipeline_mode = #tpu.pipeline_mode<synchronous>, transform_indices = @transform_8, window_bounds = array<i64: 1, 32>}, {pipeline_mode = #tpu.pipeline_mode<synchronous>, transform_indices = @transform_9, window_bounds = array<i64: 32, 32>}, {pipeline_mode = #tpu.pipeline_mode<synchronous>, transform_indices = @transform_10, window_bounds = array<i64: 1, 32>}, {pipeline_mode = #tpu.pipeline_mode<synchronous>, transform_indices = @transform_11, window_bounds = array<i64: 32, 32>}, {pipeline_mode = #tpu.pipeline_mode<synchronous>, transform_indices = @transform_12, window_bounds = array<i64: 1, 32>}, {pipeline_mode = #tpu.pipeline_mode<synchronous>, transform_indices = @transform_13, window_bounds = array<i64: 32, 32>}, {pipeline_mode = #tpu.pipeline_mode<synchronous>, transform_indices = @transform_14, window_bounds = array<i64: 1, 32>}, {transform_indices = @transform_15, window_bounds = array<i64: 2, 32>}]} {
    %c0 = arith.constant 0 : index
    %c0_0 = arith.constant 0 : index
    %c0_1 = arith.constant 0 : index
    %0 = vector.load %arg1[%c0, %c0_0, %c0_1] : memref<2x8x32xf32, #tpu.memory_space<vmem>>, vector<2x8x32xf32>
    %c0_2 = arith.constant 0 : index
    %c0_3 = arith.constant 0 : index
    %c0_4 = arith.constant 0 : index
    %1 = vector.load %arg2[%c0_2, %c0_3, %c0_4] : memref<2x8x32xf32, #tpu.memory_space<vmem>>, vector<2x8x32xf32>
    %c0_5 = arith.constant 0 : index
    %c0_6 = arith.constant 0 : index
    %2 = vector.load %arg4[%c0_5, %c0_6] : memref<2x1xf32, #tpu.memory_space<vmem>>, vector<2x1xf32>
    %c0_7 = arith.constant 0 : index
    %c0_8 = arith.constant 0 : index
    %3 = vector.load %arg5[%c0_7, %c0_8] : memref<2x1xf32, #tpu.memory_space<vmem>>, vector<2x1xf32>
    %4 = arith.mulf %2, %3 : vector<2x1xf32>
    %c0_9 = arith.constant 0 : index
    %c0_10 = arith.constant 0 : index
    %5 = vector.load %arg3[%c0_9, %c0_10] : memref<2x32xf32, #tpu.memory_space<vmem>>, vector<2x32xf32>
    %6 = arith.truncf %5 : vector<2x32xf32> to vector<2x32xbf16>
    %c0_11 = arith.constant 0 : index
    %c0_12 = arith.constant 0 : index
    %7 = vector.load %arg6[%c0_11, %c0_12] : memref<32x32xbf16, #tpu.memory_space<vmem>>, vector<32x32xbf16>
    %cst = arith.constant dense<0.000000e+00> : vector<2x32xf32>
    %8 = tpu.matmul %6, %7, %cst {dimension_numbers = #tpu.dot_dimension_numbers<[1], [0], [0], [1], [0, 0, 1, 1], [], []>} : vector<2x32xbf16>, vector<32x32xbf16>, vector<2x32xf32> -> vector<2x32xf32>
    %c0_13 = arith.constant 0 : index
    %c0_14 = arith.constant 0 : index
    %9 = vector.load %arg7[%c0_13, %c0_14] : memref<1x32xf32, #tpu.memory_space<vmem>>, vector<1x32xf32>
    %10 = vector.broadcast %9 : vector<1x32xf32> to vector<2x32xf32>
    %11 = arith.addf %8, %10 : vector<2x32xf32>
    %12 = vector.shape_cast %11 : vector<2x32xf32> to vector<2x1x32xf32>
    %13 = vector.broadcast %12 : vector<2x1x32xf32> to vector<2x8x32xf32>
    %14 = arith.mulf %0, %13 : vector<2x8x32xf32>
    %cst_15 = arith.constant dense<0.000000e+00> : vector<2x8xf32>
    %15 = vector.multi_reduction <add>, %14, %cst_15 [2] : vector<2x8x32xf32> to vector<2x8xf32>
    %16 = vector.shape_cast %15 : vector<2x8xf32> to vector<2x8x1xf32>
    %cst_16 = arith.constant dense<0xFF800000> : vector<2x1xf32>
    %17 = vector.multi_reduction <maximumf>, %16, %cst_16 [1] : vector<2x8x1xf32> to vector<2x1xf32>
    %18 = vector.shape_cast %17 : vector<2x1xf32> to vector<2x1x1xf32>
    %19 = vector.broadcast %18 : vector<2x1x1xf32> to vector<2x8x1xf32>
    %20 = arith.subf %16, %19 : vector<2x8x1xf32>
    %21 = math.exp %20 : vector<2x8x1xf32>
    %cst_17 = arith.constant dense<0.000000e+00> : vector<2x1xf32>
    %22 = vector.multi_reduction <add>, %21, %cst_17 [1] : vector<2x8x1xf32> to vector<2x1xf32>
    %23 = vector.shape_cast %22 : vector<2x1xf32> to vector<2x1x1xf32>
    %24 = vector.broadcast %21 : vector<2x8x1xf32> to vector<2x8x32xf32>
    %25 = arith.mulf %24, %0 : vector<2x8x32xf32>
    %cst_18 = arith.constant dense<0.000000e+00> : vector<2x32xf32>
    %26 = vector.multi_reduction <add>, %25, %cst_18 [1] : vector<2x8x32xf32> to vector<2x32xf32>
    %27 = vector.shape_cast %23 : vector<2x1x1xf32> to vector<2x1xf32>
    %28 = tpu.reciprocal %27 {approx = true} : vector<2x1xf32> -> vector<2x1xf32>
    %29 = vector.broadcast %28 : vector<2x1xf32> to vector<2x32xf32>
    %30 = arith.mulf %26, %29 : vector<2x32xf32>
    %31 = arith.truncf %30 : vector<2x32xf32> to vector<2x32xbf16>
    %c0_19 = arith.constant 0 : index
    %c0_20 = arith.constant 0 : index
    %32 = vector.load %arg8[%c0_19, %c0_20] : memref<32x32xbf16, #tpu.memory_space<vmem>>, vector<32x32xbf16>
    %cst_21 = arith.constant dense<0.000000e+00> : vector<2x32xf32>
    %33 = tpu.matmul %31, %32, %cst_21 {dimension_numbers = #tpu.dot_dimension_numbers<[1], [0], [0], [1], [0, 0, 1, 1], [], []>} : vector<2x32xbf16>, vector<32x32xbf16>, vector<2x32xf32> -> vector<2x32xf32>
    %c0_22 = arith.constant 0 : index
    %c0_23 = arith.constant 0 : index
    %34 = vector.load %arg9[%c0_22, %c0_23] : memref<1x32xf32, #tpu.memory_space<vmem>>, vector<1x32xf32>
    %35 = vector.broadcast %34 : vector<1x32xf32> to vector<2x32xf32>
    %36 = arith.addf %33, %35 : vector<2x32xf32>
    %37 = vector.broadcast %4 : vector<2x1xf32> to vector<2x32xf32>
    %38 = arith.mulf %36, %37 : vector<2x32xf32>
    %39 = arith.truncf %38 : vector<2x32xf32> to vector<2x32xbf16>
    %c0_24 = arith.constant 0 : index
    %c0_25 = arith.constant 0 : index
    %40 = vector.load %arg10[%c0_24, %c0_25] : memref<32x32xbf16, #tpu.memory_space<vmem>>, vector<32x32xbf16>
    %cst_26 = arith.constant dense<0.000000e+00> : vector<2x32xf32>
    %41 = tpu.matmul %39, %40, %cst_26 {dimension_numbers = #tpu.dot_dimension_numbers<[1], [0], [0], [1], [0, 0, 1, 1], [], []>} : vector<2x32xbf16>, vector<32x32xbf16>, vector<2x32xf32> -> vector<2x32xf32>
    %c0_27 = arith.constant 0 : index
    %c0_28 = arith.constant 0 : index
    %42 = vector.load %arg11[%c0_27, %c0_28] : memref<1x32xf32, #tpu.memory_space<vmem>>, vector<1x32xf32>
    %43 = vector.broadcast %42 : vector<1x32xf32> to vector<2x32xf32>
    %44 = arith.addf %41, %43 : vector<2x32xf32>
    %45 = vector.shape_cast %44 : vector<2x32xf32> to vector<2x1x32xf32>
    %46 = vector.broadcast %45 : vector<2x1x32xf32> to vector<2x8x32xf32>
    %47 = arith.mulf %1, %46 : vector<2x8x32xf32>
    %cst_29 = arith.constant dense<0.000000e+00> : vector<2x8xf32>
    %48 = vector.multi_reduction <add>, %47, %cst_29 [2] : vector<2x8x32xf32> to vector<2x8xf32>
    %49 = vector.shape_cast %48 : vector<2x8xf32> to vector<2x8x1xf32>
    %cst_30 = arith.constant dense<0xFF800000> : vector<2x1xf32>
    %50 = vector.multi_reduction <maximumf>, %49, %cst_30 [1] : vector<2x8x1xf32> to vector<2x1xf32>
    %51 = vector.shape_cast %50 : vector<2x1xf32> to vector<2x1x1xf32>
    %52 = vector.broadcast %51 : vector<2x1x1xf32> to vector<2x8x1xf32>
    %53 = arith.subf %49, %52 : vector<2x8x1xf32>
    %54 = math.exp %53 : vector<2x8x1xf32>
    %cst_31 = arith.constant dense<0.000000e+00> : vector<2x1xf32>
    %55 = vector.multi_reduction <add>, %54, %cst_31 [1] : vector<2x8x1xf32> to vector<2x1xf32>
    %56 = vector.shape_cast %55 : vector<2x1xf32> to vector<2x1x1xf32>
    %57 = vector.broadcast %54 : vector<2x8x1xf32> to vector<2x8x32xf32>
    %58 = arith.mulf %57, %1 : vector<2x8x32xf32>
    %cst_32 = arith.constant dense<0.000000e+00> : vector<2x32xf32>
    %59 = vector.multi_reduction <add>, %58, %cst_32 [1] : vector<2x8x32xf32> to vector<2x32xf32>
    %60 = vector.shape_cast %56 : vector<2x1x1xf32> to vector<2x1xf32>
    %61 = tpu.reciprocal %60 {approx = true} : vector<2x1xf32> -> vector<2x1xf32>
    %62 = vector.broadcast %61 : vector<2x1xf32> to vector<2x32xf32>
    %63 = arith.mulf %59, %62 : vector<2x32xf32>
    %64 = arith.truncf %63 : vector<2x32xf32> to vector<2x32xbf16>
    %c0_33 = arith.constant 0 : index
    %c0_34 = arith.constant 0 : index
    %65 = vector.load %arg12[%c0_33, %c0_34] : memref<32x32xbf16, #tpu.memory_space<vmem>>, vector<32x32xbf16>
    %cst_35 = arith.constant dense<0.000000e+00> : vector<2x32xf32>
    %66 = tpu.matmul %64, %65, %cst_35 {dimension_numbers = #tpu.dot_dimension_numbers<[1], [0], [0], [1], [0, 0, 1, 1], [], []>} : vector<2x32xbf16>, vector<32x32xbf16>, vector<2x32xf32> -> vector<2x32xf32>
    %c0_36 = arith.constant 0 : index
    %c0_37 = arith.constant 0 : index
    %67 = vector.load %arg13[%c0_36, %c0_37] : memref<1x32xf32, #tpu.memory_space<vmem>>, vector<1x32xf32>
    %68 = vector.broadcast %67 : vector<1x32xf32> to vector<2x32xf32>
    %69 = arith.addf %66, %68 : vector<2x32xf32>
    %70 = arith.truncf %69 : vector<2x32xf32> to vector<2x32xbf16>
    %c0_38 = arith.constant 0 : index
    %c0_39 = arith.constant 0 : index
    %71 = vector.load %arg14[%c0_38, %c0_39] : memref<32x32xbf16, #tpu.memory_space<vmem>>, vector<32x32xbf16>
    %cst_40 = arith.constant dense<0.000000e+00> : vector<2x32xf32>
    %72 = tpu.matmul %70, %71, %cst_40 {dimension_numbers = #tpu.dot_dimension_numbers<[1], [0], [0], [1], [0, 0, 1, 1], [], []>} : vector<2x32xbf16>, vector<32x32xbf16>, vector<2x32xf32> -> vector<2x32xf32>
    %c0_41 = arith.constant 0 : index
    %c0_42 = arith.constant 0 : index
    %73 = vector.load %arg15[%c0_41, %c0_42] : memref<1x32xf32, #tpu.memory_space<vmem>>, vector<1x32xf32>
    %74 = vector.broadcast %73 : vector<1x32xf32> to vector<2x32xf32>
    %75 = arith.addf %72, %74 : vector<2x32xf32>
    %cst_43 = arith.constant 0.000000e+00 : f32
    %76 = vector.broadcast %cst_43 : f32 to vector<2x32xf32>
    %77 = arith.maximumf %75, %76 : vector<2x32xf32>
    %c0_44 = arith.constant 0 : index
    %c0_45 = arith.constant 0 : index
    %78 = vector.load %arg16[%c0_44, %c0_45] : memref<2x32xf32, #tpu.memory_space<vmem>>, vector<2x32xf32>
    tpu.vector_store %arg16[%c0_44, %c0_45], %77 {strides = array<i32>} : memref<2x32xf32, #tpu.memory_space<vmem>>, vector<2x32xf32>,
    return
  }
  func.func @transform_0(%arg0: i32) -> (i32, i32, i32) {
    %c0_i32 = arith.constant 0 : i32
    %c0_i32_0 = arith.constant 0 : i32
    %c0_i32_1 = arith.constant 0 : i32
    return %arg0, %c0_i32, %c0_i32_0 : i32, i32, i32
  }
  func.func @transform_1(%arg0: i32) -> (i32, i32, i32) {
    %c0_i32 = arith.constant 0 : i32
    %c0_i32_0 = arith.constant 0 : i32
    %c0_i32_1 = arith.constant 0 : i32
    return %arg0, %c0_i32, %c0_i32_0 : i32, i32, i32
  }
  func.func @transform_2(%arg0: i32) -> (i32, i32) {
    %c0_i32 = arith.constant 0 : i32
    %c0_i32_0 = arith.constant 0 : i32
    return %arg0, %c0_i32 : i32, i32
  }
  func.func @transform_3(%arg0: i32) -> (i32, i32) {
    %c0_i32 = arith.constant 0 : i32
    %c0_i32_0 = arith.constant 0 : i32
    return %arg0, %c0_i32 : i32, i32
  }
  func.func @transform_4(%arg0: i32) -> (i32, i32) {
    %c0_i32 = arith.constant 0 : i32
    %c0_i32_0 = arith.constant 0 : i32
    return %arg0, %c0_i32 : i32, i32
  }
  func.func @transform_5(%arg0: i32) -> (i32, i32) {
    %c0_i32 = arith.constant 0 : i32
    %c0_i32_0 = arith.constant 0 : i32
    %c0_i32_1 = arith.constant 0 : i32
    return %c0_i32, %c0_i32_0 : i32, i32
  }
  func.func @transform_6(%arg0: i32) -> (i32, i32) {
    %c0_i32 = arith.constant 0 : i32
    %c0_i32_0 = arith.constant 0 : i32
    %c0_i32_1 = arith.constant 0 : i32
    return %c0_i32, %c0_i32_0 : i32, i32
  }
  func.func @transform_7(%arg0: i32) -> (i32, i32) {
    %c0_i32 = arith.constant 0 : i32
    %c0_i32_0 = arith.constant 0 : i32
    %c0_i32_1 = arith.constant 0 : i32
    return %c0_i32, %c0_i32_0 : i32, i32
  }
  func.func @transform_8(%arg0: i32) -> (i32, i32) {
    %c0_i32 = arith.constant 0 : i32
    %c0_i32_0 = arith.constant 0 : i32
    %c0_i32_1 = arith.constant 0 : i32
    return %c0_i32, %c0_i32_0 : i32, i32
  }
  func.func @transform_9(%arg0: i32) -> (i32, i32) {
    %c0_i32 = arith.constant 0 : i32
    %c0_i32_0 = arith.constant 0 : i32
    %c0_i32_1 = arith.constant 0 : i32
    return %c0_i32, %c0_i32_0 : i32, i32
  }
  func.func @transform_10(%arg0: i32) -> (i32, i32) {
    %c0_i32 = arith.constant 0 : i32
    %c0_i32_0 = arith.constant 0 : i32
    %c0_i32_1 = arith.constant 0 : i32
    return %c0_i32, %c0_i32_0 : i32, i32
  }
  func.func @transform_11(%arg0: i32) -> (i32, i32) {
    %c0_i32 = arith.constant 0 : i32
    %c0_i32_0 = arith.constant 0 : i32
    %c0_i32_1 = arith.constant 0 : i32
    return %c0_i32, %c0_i32_0 : i32, i32
  }
  func.func @transform_12(%arg0: i32) -> (i32, i32) {
    %c0_i32 = arith.constant 0 : i32
    %c0_i32_0 = arith.constant 0 : i32
    %c0_i32_1 = arith.constant 0 : i32
    return %c0_i32, %c0_i32_0 : i32, i32
  }
  func.func @transform_13(%arg0: i32) -> (i32, i32) {
    %c0_i32 = arith.constant 0 : i32
    %c0_i32_0 = arith.constant 0 : i32
    %c0_i32_1 = arith.constant 0 : i32
    return %c0_i32, %c0_i32_0 : i32, i32
  }
  func.func @transform_14(%arg0: i32) -> (i32, i32) {
    %c0_i32 = arith.constant 0 : i32
    %c0_i32_0 = arith.constant 0 : i32
    %c0_i32_1 = arith.constant 0 : i32
    return %c0_i32, %c0_i32_0 : i32, i32
  }
  func.func @transform_15(%arg0: i32) -> (i32, i32) {
    %c0_i32 = arith.constant 0 : i32
    %c0_i32_0 = arith.constant 0 : i32
    return %arg0, %c0_i32 : i32, i32
  }
}

module attributes {stable_mosaic.version = 11 : i64} {
  func.func @_fusion_kernel(%arg0: i32, %arg1: memref<2x8x32xf32, #tpu.memory_space<vmem>>, %arg2: memref<2x8x32xf32, #tpu.memory_space<vmem>>, %arg3: memref<2x32xf32, #tpu.memory_space<vmem>>, %arg4: memref<2x1xf32, #tpu.memory_space<vmem>>, %arg5: memref<2x1xf32, #tpu.memory_space<vmem>>, %arg6: memref<32x32xbf16, #tpu.memory_space<vmem>>, %arg7: memref<1x32xf32, #tpu.memory_space<vmem>>, %arg8: memref<32x32xbf16, #tpu.memory_space<vmem>>, %arg9: memref<1x32xf32, #tpu.memory_space<vmem>>, %arg10: memref<32x32xbf16, #tpu.memory_space<vmem>>, %arg11: memref<1x32xf32, #tpu.memory_space<vmem>>, %arg12: memref<32x32xbf16, #tpu.memory_space<vmem>>, %arg13: memref<1x32xf32, #tpu.memory_space<vmem>>, %arg14: memref<32x32xbf16, #tpu.memory_space<vmem>>, %arg15: memref<1x32xf32, #tpu.memory_space<vmem>>, %arg16: memref<2x32xf32, #tpu.memory_space<vmem>>) attributes {dimension_semantics = [#tpu.dimension_semantics<parallel>], iteration_bounds = array<i64: 1>, scalar_prefetch = 0 : i64, scratch_operands = 0 : i64, tpu.core_type = #tpu.core_type<tc>, window_params = [{transform_indices = @transform_0, window_bounds = array<i64: 2, 8, 32>}, {transform_indices = @transform_1, window_bounds = array<i64: 2, 8, 32>}, {transform_indices = @transform_2, window_bounds = array<i64: 2, 32>}, {transform_indices = @transform_3, window_bounds = array<i64: 2, 1>}, {transform_indices = @transform_4, window_bounds = array<i64: 2, 1>}, {pipeline_mode = #tpu.pipeline_mode<synchronous>, transform_indices = @transform_5, window_bounds = array<i64: 32, 32>}, {pipeline_mode = #tpu.pipeline_mode<synchronous>, transform_indices = @transform_6, window_bounds = array<i64: 1, 32>}, {pipeline_mode = #tpu.pipeline_mode<synchronous>, transform_indices = @transform_7, window_bounds = array<i64: 32, 32>}, {pipeline_mode = #tpu.pipeline_mode<synchronous>, transform_indices = @transform_8, window_bounds = array<i64: 1, 32>}, {pipeline_mode = #tpu.pipeline_mode<synchronous>, transform_indices = @transform_9, window_bounds = array<i64: 32, 32>}, {pipeline_mode = #tpu.pipeline_mode<synchronous>, transform_indices = @transform_10, window_bounds = array<i64: 1, 32>}, {pipeline_mode = #tpu.pipeline_mode<synchronous>, transform_indices = @transform_11, window_bounds = array<i64: 32, 32>}, {pipeline_mode = #tpu.pipeline_mode<synchronous>, transform_indices = @transform_12, window_bounds = array<i64: 1, 32>}, {pipeline_mode = #tpu.pipeline_mode<synchronous>, transform_indices = @transform_13, window_bounds = array<i64: 32, 32>}, {pipeline_mode = #tpu.pipeline_mode<synchronous>, transform_indices = @transform_14, window_bounds = array<i64: 1, 32>}, {transform_indices = @transform_15, window_bounds = array<i64: 2, 32>}]} {
    %c0 = arith.constant 0 : index
    %c0_0 = arith.constant 0 : index
    %c0_1 = arith.constant 0 : index
    %0 = vector.load %arg1[%c0, %c0_0, %c0_1] : memref<2x8x32xf32, #tpu.memory_space<vmem>>, vector<2x8x32xf32>
    %c0_2 = arith.constant 0 : index
    %c0_3 = arith.constant 0 : index
    %c0_4 = arith.constant 0 : index
    %1 = vector.load %arg2[%c0_2, %c0_3, %c0_4] : memref<2x8x32xf32, #tpu.memory_space<vmem>>, vector<2x8x32xf32>
    %c0_5 = arith.constant 0 : index
    %c0_6 = arith.constant 0 : index
    %2 = vector.load %arg4[%c0_5, %c0_6] : memref<2x1xf32, #tpu.memory_space<vmem>>, vector<2x1xf32>
    %c0_7 = arith.constant 0 : index
    %c0_8 = arith.constant 0 : index
    %3 = vector.load %arg5[%c0_7, %c0_8] : memref<2x1xf32, #tpu.memory_space<vmem>>, vector<2x1xf32>
    %4 = arith.mulf %2, %3 : vector<2x1xf32>
    %c0_9 = arith.constant 0 : index
    %c0_10 = arith.constant 0 : index
    %5 = vector.load %arg3[%c0_9, %c0_10] : memref<2x32xf32, #tpu.memory_space<vmem>>, vector<2x32xf32>
    %6 = arith.truncf %5 : vector<2x32xf32> to vector<2x32xbf16>
    %c0_11 = arith.constant 0 : index
    %c0_12 = arith.constant 0 : index
    %7 = vector.load %arg6[%c0_11, %c0_12] : memref<32x32xbf16, #tpu.memory_space<vmem>>, vector<32x32xbf16>
    %cst = arith.constant dense<0.000000e+00> : vector<2x32xf32>
    %8 = tpu.matmul %6, %7, %cst {dimension_numbers = #tpu.dot_dimension_numbers<[1], [0], [0], [1], [0, 0, 1, 1], [], []>} : vector<2x32xbf16>, vector<32x32xbf16>, vector<2x32xf32> -> vector<2x32xf32>
    %c0_13 = arith.constant 0 : index
    %c0_14 = arith.constant 0 : index
    %9 = vector.load %arg7[%c0_13, %c0_14] : memref<1x32xf32, #tpu.memory_space<vmem>>, vector<1x32xf32>
    %10 = vector.broadcast %9 : vector<1x32xf32> to vector<2x32xf32>
    %11 = arith.addf %8, %10 : vector<2x32xf32>
    %12 = vector.shape_cast %11 : vector<2x32xf32> to vector<2x1x32xf32>
    %13 = vector.broadcast %12 : vector<2x1x32xf32> to vector<2x8x32xf32>
    %14 = arith.mulf %0, %13 : vector<2x8x32xf32>
    %cst_15 = arith.constant dense<0.000000e+00> : vector<2x8xf32>
    %15 = vector.multi_reduction <add>, %14, %cst_15 [2] : vector<2x8x32xf32> to vector<2x8xf32>
    %16 = vector.shape_cast %15 : vector<2x8xf32> to vector<2x8x1xf32>
    %cst_16 = arith.constant dense<0xFF800000> : vector<2x1xf32>
    %17 = vector.multi_reduction <maximumf>, %16, %cst_16 [1] : vector<2x8x1xf32> to vector<2x1xf32>
    %18 = vector.shape_cast %17 : vector<2x1xf32> to vector<2x1x1xf32>
    %19 = vector.broadcast %18 : vector<2x1x1xf32> to vector<2x8x1xf32>
    %20 = arith.subf %16, %19 : vector<2x8x1xf32>
    %21 = math.exp %20 : vector<2x8x1xf32>
    %cst_17 = arith.constant dense<0.000000e+00> : vector<2x1xf32>
    %22 = vector.multi_reduction <add>, %21, %cst_17 [1] : vector<2x8x1xf32> to vector<2x1xf32>
    %23 = vector.shape_cast %22 : vector<2x1xf32> to vector<2x1x1xf32>
    %24 = vector.broadcast %21 : vector<2x8x1xf32> to vector<2x8x32xf32>
    %25 = arith.mulf %24, %0 : vector<2x8x32xf32>
    %cst_18 = arith.constant dense<0.000000e+00> : vector<2x32xf32>
    %26 = vector.multi_reduction <add>, %25, %cst_18 [1] : vector<2x8x32xf32> to vector<2x32xf32>
    %27 = vector.shape_cast %23 : vector<2x1x1xf32> to vector<2x1xf32>
    %28 = tpu.reciprocal %27 {approx = true} : vector<2x1xf32> -> vector<2x1xf32>
    %29 = vector.broadcast %28 : vector<2x1xf32> to vector<2x32xf32>
    %30 = arith.mulf %26, %29 : vector<2x32xf32>
    %31 = arith.truncf %30 : vector<2x32xf32> to vector<2x32xbf16>
    %c0_19 = arith.constant 0 : index
    %c0_20 = arith.constant 0 : index
    %32 = vector.load %arg8[%c0_19, %c0_20] : memref<32x32xbf16, #tpu.memory_space<vmem>>, vector<32x32xbf16>
    %cst_21 = arith.constant dense<0.000000e+00> : vector<2x32xf32>
    %33 = tpu.matmul %31, %32, %cst_21 {dimension_numbers = #tpu.dot_dimension_numbers<[1], [0], [0], [1], [0, 0, 1, 1], [], []>} : vector<2x32xbf16>, vector<32x32xbf16>, vector<2x32xf32> -> vector<2x32xf32>
    %c0_22 = arith.constant 0 : index
    %c0_23 = arith.constant 0 : index
    %34 = vector.load %arg9[%c0_22, %c0_23] : memref<1x32xf32, #tpu.memory_space<vmem>>, vector<1x32xf32>
    %35 = vector.broadcast %34 : vector<1x32xf32> to vector<2x32xf32>
    %36 = arith.addf %33, %35 : vector<2x32xf32>
    %37 = vector.broadcast %4 : vector<2x1xf32> to vector<2x32xf32>
    %38 = arith.mulf %36, %37 : vector<2x32xf32>
    %39 = arith.truncf %38 : vector<2x32xf32> to vector<2x32xbf16>
    %c0_24 = arith.constant 0 : index
    %c0_25 = arith.constant 0 : index
    %40 = vector.load %arg10[%c0_24, %c0_25] : memref<32x32xbf16, #tpu.memory_space<vmem>>, vector<32x32xbf16>
    %cst_26 = arith.constant dense<0.000000e+00> : vector<2x32xf32>
    %41 = tpu.matmul %39, %40, %cst_26 {dimension_numbers = #tpu.dot_dimension_numbers<[1], [0], [0], [1], [0, 0, 1, 1], [], []>} : vector<2x32xbf16>, vector<32x32xbf16>, vector<2x32xf32> -> vector<2x32xf32>
    %c0_27 = arith.constant 0 : index
    %c0_28 = arith.constant 0 : index
    %42 = vector.load %arg11[%c0_27, %c0_28] : memref<1x32xf32, #tpu.memory_space<vmem>>, vector<1x32xf32>
    %43 = vector.broadcast %42 : vector<1x32xf32> to vector<2x32xf32>
    %44 = arith.addf %41, %43 : vector<2x32xf32>
    %45 = vector.shape_cast %44 : vector<2x32xf32> to vector<2x1x32xf32>
    %46 = vector.broadcast %45 : vector<2x1x32xf32> to vector<2x8x32xf32>
    %47 = arith.mulf %1, %46 : vector<2x8x32xf32>
    %cst_29 = arith.constant dense<0.000000e+00> : vector<2x8xf32>
    %48 = vector.multi_reduction <add>, %47, %cst_29 [2] : vector<2x8x32xf32> to vector<2x8xf32>
    %49 = vector.shape_cast %48 : vector<2x8xf32> to vector<2x8x1xf32>
    %cst_30 = arith.constant dense<0xFF800000> : vector<2x1xf32>
    %50 = vector.multi_reduction <maximumf>, %49, %cst_30 [1] : vector<2x8x1xf32> to vector<2x1xf32>
    %51 = vector.shape_cast %50 : vector<2x1xf32> to vector<2x1x1xf32>
    %52 = vector.broadcast %51 : vector<2x1x1xf32> to vector<2x8x1xf32>
    %53 = arith.subf %49, %52 : vector<2x8x1xf32>
    %54 = math.exp %53 : vector<2x8x1xf32>
    %cst_31 = arith.constant dense<0.000000e+00> : vector<2x1xf32>
    %55 = vector.multi_reduction <add>, %54, %cst_31 [1] : vector<2x8x1xf32> to vector<2x1xf32>
    %56 = vector.shape_cast %55 : vector<2x1xf32> to vector<2x1x1xf32>
    %57 = vector.broadcast %54 : vector<2x8x1xf32> to vector<2x8x32xf32>
    %58 = arith.mulf %57, %1 : vector<2x8x32xf32>
    %cst_32 = arith.constant dense<0.000000e+00> : vector<2x32xf32>
    %59 = vector.multi_reduction <add>, %58, %cst_32 [1] : vector<2x8x32xf32> to vector<2x32xf32>
    %60 = vector.shape_cast %56 : vector<2x1x1xf32> to vector<2x1xf32>
    %61 = tpu.reciprocal %60 {approx = true} : vector<2x1xf32> -> vector<2x1xf32>
    %62 = vector.broadcast %61 : vector<2x1xf32> to vector<2x32xf32>
    %63 = arith.mulf %59, %62 : vector<2x32xf32>
    %64 = arith.truncf %63 : vector<2x32xf32> to vector<2x32xbf16>
    %c0_33 = arith.constant 0 : index
    %c0_34 = arith.constant 0 : index
    %65 = vector.load %arg12[%c0_33, %c0_34] : memref<32x32xbf16, #tpu.memory_space<vmem>>, vector<32x32xbf16>
    %cst_35 = arith.constant dense<0.000000e+00> : vector<2x32xf32>
    %66 = tpu.matmul %64, %65, %cst_35 {dimension_numbers = #tpu.dot_dimension_numbers<[1], [0], [0], [1], [0, 0, 1, 1], [], []>} : vector<2x32xbf16>, vector<32x32xbf16>, vector<2x32xf32> -> vector<2x32xf32>
    %c0_36 = arith.constant 0 : index
    %c0_37 = arith.constant 0 : index
    %67 = vector.load %arg13[%c0_36, %c0_37] : memref<1x32xf32, #tpu.memory_space<vmem>>, vector<1x32xf32>
    %68 = vector.broadcast %67 : vector<1x32xf32> to vector<2x32xf32>
    %69 = arith.addf %66, %68 : vector<2x32xf32>
    %70 = arith.truncf %69 : vector<2x32xf32> to vector<2x32xbf16>
    %c0_38 = arith.constant 0 : index
    %c0_39 = arith.constant 0 : index
    %71 = vector.load %arg14[%c0_38, %c0_39] : memref<32x32xbf16, #tpu.memory_space<vmem>>, vector<32x32xbf16>
    %cst_40 = arith.constant dense<0.000000e+00> : vector<2x32xf32>
    %72 = tpu.matmul %70, %71, %cst_40 {dimension_numbers = #tpu.dot_dimension_numbers<[1], [0], [0], [1], [0, 0, 1, 1], [], []>} : vector<2x32xbf16>, vector<32x32xbf16>, vector<2x32xf32> -> vector<2x32xf32>
    %c0_41 = arith.constant 0 : index
    %c0_42 = arith.constant 0 : index
    %73 = vector.load %arg15[%c0_41, %c0_42] : memref<1x32xf32, #tpu.memory_space<vmem>>, vector<1x32xf32>
    %74 = vector.broadcast %73 : vector<1x32xf32> to vector<2x32xf32>
    %75 = arith.addf %72, %74 : vector<2x32xf32>
    %cst_43 = arith.constant 0.000000e+00 : f32
    %76 = vector.broadcast %cst_43 : f32 to vector<2x32xf32>
    %77 = arith.maximumf %75, %76 : vector<2x32xf32>
    %c0_44 = arith.constant 0 : index
    %c0_45 = arith.constant 0 : index
    %78 = vector.load %arg16[%c0_44, %c0_45] : memref<2x32xf32, #tpu.memory_space<vmem>>, vector<2x32xf32>
    tpu.vector_store %arg16[%c0_44, %c0_45], %77 {strides = array<i32>} : memref<2x32xf32, #tpu.memory_space<vmem>>, vector<2x32xf32>,
    return
  }
  func.func @transform_0(%arg0: i32) -> (i32, i32, i32) {
    %c0_i32 = arith.constant 0 : i32
    %c0_i32_0 = arith.constant 0 : i32
    %c0_i32_1 = arith.constant 0 : i32
    return %arg0, %c0_i32, %c0_i32_0 : i32, i32, i32
  }
  func.func @transform_1(%arg0: i32) -> (i32, i32, i32) {
    %c0_i32 = arith.constant 0 : i32
    %c0_i32_0 = arith.constant 0 : i32
    %c0_i32_1 = arith.constant 0 : i32
    return %arg0, %c0_i32, %c0_i32_0 : i32, i32, i32
  }
  func.func @transform_2(%arg0: i32) -> (i32, i32) {
    %c0_i32 = arith.constant 0 : i32
    %c0_i32_0 = arith.constant 0 : i32
    return %arg0, %c0_i32 : i32, i32
  }
  func.func @transform_3(%arg0: i32) -> (i32, i32) {
    %c0_i32 = arith.constant 0 : i32
    %c0_i32_0 = arith.constant 0 : i32
    return %arg0, %c0_i32 : i32, i32
  }
  func.func @transform_4(%arg0: i32) -> (i32, i32) {
    %c0_i32 = arith.constant 0 : i32
    %c0_i32_0 = arith.constant 0 : i32
    return %arg0, %c0_i32 : i32, i32
  }
  func.func @transform_5(%arg0: i32) -> (i32, i32) {
    %c0_i32 = arith.constant 0 : i32
    %c0_i32_0 = arith.constant 0 : i32
    %c0_i32_1 = arith.constant 0 : i32
    return %c0_i32, %c0_i32_0 : i32, i32
  }
  func.func @transform_6(%arg0: i32) -> (i32, i32) {
    %c0_i32 = arith.constant 0 : i32
    %c0_i32_0 = arith.constant 0 : i32
    %c0_i32_1 = arith.constant 0 : i32
    return %c0_i32, %c0_i32_0 : i32, i32
  }
  func.func @transform_7(%arg0: i32) -> (i32, i32) {
    %c0_i32 = arith.constant 0 : i32
    %c0_i32_0 = arith.constant 0 : i32
    %c0_i32_1 = arith.constant 0 : i32
    return %c0_i32, %c0_i32_0 : i32, i32
  }
  func.func @transform_8(%arg0: i32) -> (i32, i32) {
    %c0_i32 = arith.constant 0 : i32
    %c0_i32_0 = arith.constant 0 : i32
    %c0_i32_1 = arith.constant 0 : i32
    return %c0_i32, %c0_i32_0 : i32, i32
  }
  func.func @transform_9(%arg0: i32) -> (i32, i32) {
    %c0_i32 = arith.constant 0 : i32
    %c0_i32_0 = arith.constant 0 : i32
    %c0_i32_1 = arith.constant 0 : i32
    return %c0_i32, %c0_i32_0 : i32, i32
  }
  func.func @transform_10(%arg0: i32) -> (i32, i32) {
    %c0_i32 = arith.constant 0 : i32
    %c0_i32_0 = arith.constant 0 : i32
    %c0_i32_1 = arith.constant 0 : i32
    return %c0_i32, %c0_i32_0 : i32, i32
  }
  func.func @transform_11(%arg0: i32) -> (i32, i32) {
    %c0_i32 = arith.constant 0 : i32
    %c0_i32_0 = arith.constant 0 : i32
    %c0_i32_1 = arith.constant 0 : i32
    return %c0_i32, %c0_i32_0 : i32, i32
  }
  func.func @transform_12(%arg0: i32) -> (i32, i32) {
    %c0_i32 = arith.constant 0 : i32
    %c0_i32_0 = arith.constant 0 : i32
    %c0_i32_1 = arith.constant 0 : i32
    return %c0_i32, %c0_i32_0 : i32, i32
  }
  func.func @transform_13(%arg0: i32) -> (i32, i32) {
    %c0_i32 = arith.constant 0 : i32
    %c0_i32_0 = arith.constant 0 : i32
    %c0_i32_1 = arith.constant 0 : i32
    return %c0_i32, %c0_i32_0 : i32, i32
  }
  func.func @transform_14(%arg0: i32) -> (i32, i32) {
    %c0_i32 = arith.constant 0 : i32
    %c0_i32_0 = arith.constant 0 : i32
    %c0_i32_1 = arith.constant 0 : i32
    return %c0_i32, %c0_i32_0 : i32, i32
  }
  func.func @transform_15(%arg0: i32) -> (i32, i32) {
    %c0_i32 = arith.constant 0 : i32
    %c0_i32_0 = arith.constant 0 : i32
    return %arg0, %c0_i32 : i32, i32
  }
}

</mosaic_0001>

<llo_original>
// kernel: tpu_custom_call.1
$region0: #{tpu_custom_call.1}
  #allocation0 [shape = 'u32[]', space=smem, size = 0x4, offset = 0x4, fixed_abs, tag = 'smem constant byte address 0x4 - core index']
  #allocation1 [shape = 'u32[72,128]{1,0:T(1,128)}', space=vmem, size = 0x9000, scoped, tag = 'internal scratch']
  %s0 = inlined_call_operand.hbm [shape: f32[2,8,32], index: 0, kind: input, shape index: {}]
  %s1 = inlined_call_operand.hbm [shape: f32[2,8,32], index: 1, kind: input, shape index: {}]
  %s2 = inlined_call_operand.vmem [shape: f32[2,32], index: 2, kind: input, shape index: {}]
  %s3 = inlined_call_operand.vmem [shape: f32[2,1], index: 3, kind: input, shape index: {}]
  %s4 = inlined_call_operand.vmem [shape: f32[2,1], index: 4, kind: input, shape index: {}]
  %s5 = inlined_call_operand.hbm [shape: bf16[32,32], index: 5, kind: input, shape index: {}]
  %s6 = inlined_call_operand.vmem [shape: f32[1,32], index: 6, kind: input, shape index: {}]
  %s7 = inlined_call_operand.hbm [shape: bf16[32,32], index: 7, kind: input, shape index: {}]
  %s8 = inlined_call_operand.vmem [shape: f32[1,32], index: 8, kind: input, shape index: {}]
  %s9 = inlined_call_operand.hbm [shape: bf16[32,32], index: 9, kind: input, shape index: {}]
  %s10 = inlined_call_operand.vmem [shape: f32[1,32], index: 10, kind: input, shape index: {}]
  %s11 = inlined_call_operand.hbm [shape: bf16[32,32], index: 11, kind: input, shape index: {}]
  %s12 = inlined_call_operand.vmem [shape: f32[1,32], index: 12, kind: input, shape index: {}]
  %s13 = inlined_call_operand.hbm [shape: bf16[32,32], index: 13, kind: input, shape index: {}]
  %s14 = inlined_call_operand.vmem [shape: f32[1,32], index: 14, kind: input, shape index: {}]
  %s15 = inlined_call_operand.hbm [shape: f32[2,32], index: 15, kind: output, shape index: {}]
  %s16 = sld [smem:[#allocation0]]
  $region98: #{tpu_custom_call.1} parent=0
    _
  %s18 = ssub.s32 1, %s16
  %s19 = scalar_select 0, %s18, %s16
  $region1: #{tpu_custom_call.1} parent=0
    #allocation2 [shape = 'u8[8192]{0}', space=vmem, size = 0x2000, scoped, tag = 'input window, operand 0, single buffered']
    #allocation3 [shape = 's32[1]{0}', space=sflag, size = 0x4, scoped, tag = 'scoped memory for tpu_custom_call.1']
    #allocation4 [shape = 's32[1]{0}', space=sflag, size = 0x4, scoped, tag = 'scoped memory for tpu_custom_call.1']
    #allocation5 [shape = 'u8[8192]{0}', space=vmem, size = 0x2000, scoped, tag = 'input window, operand 1, single buffered']
    #allocation6 [shape = 's32[1]{0}', space=sflag, size = 0x4, scoped, tag = 'scoped memory for tpu_custom_call.1']
    #allocation7 [shape = 'u8[8192]{0}', space=vmem, size = 0x2000, scoped, tag = 'input window, operand 5, single buffered']
    #allocation8 [shape = 'u8[8192]{0}', space=vmem, size = 0x2000, scoped, tag = 'input window, operand 7, single buffered']
    #allocation9 [shape = 's32[1]{0}', space=sflag, size = 0x4, scoped, tag = 'scoped memory for tpu_custom_call.1']
    #allocation10 [shape = 'u8[8192]{0}', space=vmem, size = 0x2000, scoped, tag = 'input window, operand 9, single buffered']
    #allocation11 [shape = 'u8[8192]{0}', space=vmem, size = 0x2000, scoped, tag = 'input window, operand 11, single buffered']
    #allocation12 [shape = 's32[1]{0}', space=sflag, size = 0x4, scoped, tag = 'scoped memory for tpu_custom_call.1']
    #allocation13 [shape = 'u8[8192]{0}', space=vmem, size = 0x2000, scoped, tag = 'input window, operand 13, single buffered']
    #allocation14 [shape = 'u8[1024]{0}', space=vmem, size = 0x400, scoped, tag = 'output window, operand 0, single buffered']
    %20 = vsyncpa [#allocation3], 0
    %21 = vsyncpa [#allocation6], 0
    %22 = vsyncpa [#allocation9], 0
    %23 = vsyncpa [#allocation12], 0
    %24 = vsyncpa [#allocation4], 0
    // Predicated region
    $region2: #{tpu_custom_call.1} parent=1 // pred_check
      _
    $region3: #{tpu_custom_call.1} parent=1 // pred_check_branch
      %26 = sbr.rel (0) target = $region5
    $region4: #{tpu_custom_call.1} parent=1 // pred_region
      %28 = vsyncadd [#allocation3], 0
      %s29 = sshll.u32 %s0, 4
      %s30 = int_to_ptr.hbm [resolvable:$true] %s29
      %s31 = sshll.u32 [#allocation2], 4
      %s32 = int_to_ptr.vmem [resolvable:$true] %s31
      %37 = dma.hbm_to_vmem [thread:$0]  %s30, 256, %s32, [#allocation3], 128, 128, 8
    $region5: #{tpu_custom_call.1} parent=1 // pred_fallthru
      _
    // Predicated region
    $region6: #{tpu_custom_call.1} parent=1 // pred_check
      _
    $region7: #{tpu_custom_call.1} parent=1 // pred_check_branch
      %39 = sbr.rel (0) target = $region9
    $region8: #{tpu_custom_call.1} parent=1 // pred_region
      %41 = vsyncadd [#allocation6], 0
      %s42 = sshll.u32 %s1, 4
      %s43 = int_to_ptr.hbm [resolvable:$true] %s42
      %s44 = sshll.u32 [#allocation5], 4
      %s45 = int_to_ptr.vmem [resolvable:$true] %s44
      %50 = dma.hbm_to_vmem [thread:$0]  %s43, 256, %s45, [#allocation6], 128, 128, 8
    $region9: #{tpu_custom_call.1} parent=1 // pred_fallthru
      _
    // Predicated region
    $region10: #{tpu_custom_call.1} parent=1 // pred_check
      _
    $region11: #{tpu_custom_call.1} parent=1 // pred_check_branch
      %52 = sbr.rel (0) target = $region13
    $region12: #{tpu_custom_call.1} parent=1 // pred_region
      _
    $region13: #{tpu_custom_call.1} parent=1 // pred_fallthru
      _
    // Predicated region
    $region14: #{tpu_custom_call.1} parent=1 // pred_check
      _
    $region15: #{tpu_custom_call.1} parent=1 // pred_check_branch
      %54 = sbr.rel (0) target = $region17
    $region16: #{tpu_custom_call.1} parent=1 // pred_region
      _
    $region17: #{tpu_custom_call.1} parent=1 // pred_fallthru
      _
    // Predicated region
    $region18: #{tpu_custom_call.1} parent=1 // pred_check
      _
    $region19: #{tpu_custom_call.1} parent=1 // pred_check_branch
      %56 = sbr.rel (0) target = $region21
    $region20: #{tpu_custom_call.1} parent=1 // pred_region
      _
    $region21: #{tpu_custom_call.1} parent=1 // pred_fallthru
      _
    // Predicated region
    $region22: #{tpu_custom_call.1} parent=1 // pred_check
      _
    $region23: #{tpu_custom_call.1} parent=1 // pred_check_branch
      %58 = sbr.rel (0) target = $region25
    $region24: #{tpu_custom_call.1} parent=1 // pred_region
      %60 = vsyncadd [#allocation6], 0
      %s61 = sshll.u32 %s5, 4
      %s62 = int_to_ptr.hbm [resolvable:$true] %s61
      %s63 = sshll.u32 [#allocation7], 4
      %s64 = int_to_ptr.vmem [resolvable:$true] %s63
      %69 = dma.hbm_to_vmem [thread:$0]  %s62, 256, %s64, [#allocation6], 64, 64, 4
    $region25: #{tpu_custom_call.1} parent=1 // pred_fallthru
      _
    // Predicated region
    $region26: #{tpu_custom_call.1} parent=1 // pred_check
      _
    $region27: #{tpu_custom_call.1} parent=1 // pred_check_branch
      %71 = sbr.rel (0) target = $region29
    $region28: #{tpu_custom_call.1} parent=1 // pred_region
      _
    $region29: #{tpu_custom_call.1} parent=1 // pred_fallthru
      _
    // Predicated region
    $region30: #{tpu_custom_call.1} parent=1 // pred_check
      _
    $region31: #{tpu_custom_call.1} parent=1 // pred_check_branch
      %73 = sbr.rel (0) target = $region33
    $region32: #{tpu_custom_call.1} parent=1 // pred_region
      %75 = vsyncadd [#allocation9], 0
      %s76 = sshll.u32 %s7, 4
      %s77 = int_to_ptr.hbm [resolvable:$true] %s76
      %s78 = sshll.u32 [#allocation8], 4
      %s79 = int_to_ptr.vmem [resolvable:$true] %s78
      %84 = dma.hbm_to_vmem [thread:$0]  %s77, 256, %s79, [#allocation9], 64, 64, 4
    $region33: #{tpu_custom_call.1} parent=1 // pred_fallthru
      _
    // Predicated region
    $region34: #{tpu_custom_call.1} parent=1 // pred_check
      _
    $region35: #{tpu_custom_call.1} parent=1 // pred_check_branch
      %86 = sbr.rel (0) target = $region37
    $region36: #{tpu_custom_call.1} parent=1 // pred_region
      _
    $region37: #{tpu_custom_call.1} parent=1 // pred_fallthru
      _
    // Predicated region
    $region38: #{tpu_custom_call.1} parent=1 // pred_check
      _
    $region39: #{tpu_custom_call.1} parent=1 // pred_check_branch
      %88 = sbr.rel (0) target = $region41
    $region40: #{tpu_custom_call.1} parent=1 // pred_region
      %90 = vsyncadd [#allocation9], 0
      %s91 = sshll.u32 %s9, 4
      %s92 = int_to_ptr.hbm [resolvable:$true] %s91
      %s93 = sshll.u32 [#allocation10], 4
      %s94 = int_to_ptr.vmem [resolvable:$true] %s93
      %99 = dma.hbm_to_vmem [thread:$0]  %s92, 256, %s94, [#allocation9], 64, 64, 4
    $region41: #{tpu_custom_call.1} parent=1 // pred_fallthru
      _
    // Predicated region
    $region42: #{tpu_custom_call.1} parent=1 // pred_check
      _
    $region43: #{tpu_custom_call.1} parent=1 // pred_check_branch
      %101 = sbr.rel (0) target = $region45
    $region44: #{tpu_custom_call.1} parent=1 // pred_region
      _
    $region45: #{tpu_custom_call.1} parent=1 // pred_fallthru
      _
    // Predicated region
    $region46: #{tpu_custom_call.1} parent=1 // pred_check
      _
    $region47: #{tpu_custom_call.1} parent=1 // pred_check_branch
      %103 = sbr.rel (0) target = $region49
    $region48: #{tpu_custom_call.1} parent=1 // pred_region
      %105 = vsyncadd [#allocation12], 0
      %s106 = sshll.u32 %s11, 4
      %s107 = int_to_ptr.hbm [resolvable:$true] %s106
      %s108 = sshll.u32 [#allocation11], 4
      %s109 = int_to_ptr.vmem [resolvable:$true] %s108
      %114 = dma.hbm_to_vmem [thread:$0]  %s107, 256, %s109, [#allocation12], 64, 64, 4
    $region49: #{tpu_custom_call.1} parent=1 // pred_fallthru
      _
    // Predicated region
    $region50: #{tpu_custom_call.1} parent=1 // pred_check
      _
    $region51: #{tpu_custom_call.1} parent=1 // pred_check_branch
      %116 = sbr.rel (0) target = $region53
    $region52: #{tpu_custom_call.1} parent=1 // pred_region
      _
    $region53: #{tpu_custom_call.1} parent=1 // pred_fallthru
      _
    // Predicated region
    $region54: #{tpu_custom_call.1} parent=1 // pred_check
      _
    $region55: #{tpu_custom_call.1} parent=1 // pred_check_branch
      %118 = sbr.rel (0) target = $region57
    $region56: #{tpu_custom_call.1} parent=1 // pred_region
      %120 = vsyncadd [#allocation12], 0
      %s121 = sshll.u32 %s13, 4
      %s122 = int_to_ptr.hbm [resolvable:$true] %s121
      %s123 = sshll.u32 [#allocation13], 4
      %s124 = int_to_ptr.vmem [resolvable:$true] %s123
      %129 = dma.hbm_to_vmem [thread:$0]  %s122, 256, %s124, [#allocation12], 64, 64, 4
    $region57: #{tpu_custom_call.1} parent=1 // pred_fallthru
      _
    // Predicated region
    $region58: #{tpu_custom_call.1} parent=1 // pred_check
      _
    $region59: #{tpu_custom_call.1} parent=1 // pred_check_branch
      %131 = sbr.rel (0) target = $region61
    $region60: #{tpu_custom_call.1} parent=1 // pred_region
      _
    $region61: #{tpu_custom_call.1} parent=1 // pred_fallthru
      _
    // Predicated region
    $region62: #{tpu_custom_call.1} parent=1 // pred_check
      _
    $region63: #{tpu_custom_call.1} parent=1 // pred_check_branch
      %133 = sbr.rel (0) target = $region65
    $region64: #{tpu_custom_call.1} parent=1 // pred_region
      %135 = dma.done [#allocation3], 256
    $region65: #{tpu_custom_call.1} parent=1 // pred_fallthru
      _
    // Predicated region
    $region66: #{tpu_custom_call.1} parent=1 // pred_check
      _
    $region67: #{tpu_custom_call.1} parent=1 // pred_check_branch
      %137 = sbr.rel (0) target = $region69
    $region68: #{tpu_custom_call.1} parent=1 // pred_region
      %139 = dma.done [#allocation6], 256
    $region69: #{tpu_custom_call.1} parent=1 // pred_fallthru
      _
    // Predicated region
    $region70: #{tpu_custom_call.1} parent=1 // pred_check
      _
    $region71: #{tpu_custom_call.1} parent=1 // pred_check_branch
      %141 = sbr.rel (0) target = $region73
    $region72: #{tpu_custom_call.1} parent=1 // pred_region
      %143 = dma.done [#allocation6], 256
    $region73: #{tpu_custom_call.1} parent=1 // pred_fallthru
      _
    // Predicated region
    $region74: #{tpu_custom_call.1} parent=1 // pred_check
      _
    $region75: #{tpu_custom_call.1} parent=1 // pred_check_branch
      %145 = sbr.rel (0) target = $region77
    $region76: #{tpu_custom_call.1} parent=1 // pred_region
      %147 = dma.done [#allocation9], 256
    $region77: #{tpu_custom_call.1} parent=1 // pred_fallthru
      _
    // Predicated region
    $region78: #{tpu_custom_call.1} parent=1 // pred_check
      _
    $region79: #{tpu_custom_call.1} parent=1 // pred_check_branch
      %149 = sbr.rel (0) target = $region81
    $region80: #{tpu_custom_call.1} parent=1 // pred_region
      %151 = dma.done [#allocation9], 256
    $region81: #{tpu_custom_call.1} parent=1 // pred_fallthru
      _
    // Predicated region
    $region82: #{tpu_custom_call.1} parent=1 // pred_check
      _
    $region83: #{tpu_custom_call.1} parent=1 // pred_check_branch
      %153 = sbr.rel (0) target = $region85
    $region84: #{tpu_custom_call.1} parent=1 // pred_region
      %155 = dma.done [#allocation12], 256
    $region85: #{tpu_custom_call.1} parent=1 // pred_fallthru
      _
    // Predicated region
    $region86: #{tpu_custom_call.1} parent=1 // pred_check
      _
    $region87: #{tpu_custom_call.1} parent=1 // pred_check_branch
      %157 = sbr.rel (0) target = $region89
    $region88: #{tpu_custom_call.1} parent=1 // pred_region
      %159 = dma.done [#allocation12], 256
    $region89: #{tpu_custom_call.1} parent=1 // pred_fallthru
      _
    %v161 = vld [vmem:[#allocation2] sm:$0xff]
    %v162 = vld [vmem:[#allocation2 + $0x8] sm:$0xff]
    %v163 = vld [vmem:[#allocation5] sm:$0xff]
    %v164 = vld [vmem:[#allocation5 + $0x8] sm:$0xff]
    %v165 = vld [vmem:[%s3] sm:$0x3]
    %v166 = vld [vmem:[%s4] sm:$0x3]
    %v167 = vmul.f32 %v165, %v166
    %v168 = vld [vmem:[%s2] sm:$0x3]
    %v169 = vpack.c.bf16 %v168, %v168
    %v170 = vld [vmem:[#allocation7] sm:$0xf]
    %v171 = vld [vmem:[#allocation7 + $0x4] sm:$0xf]
    %v172 = vld [vmem:[#allocation7 + $0x8] sm:$0xf]
    %v173 = vld [vmem:[#allocation7 + $0xc] sm:$0xf]
    %v174 = vld [vmem:[%s6] sm:$0x1]
    %v176 = vperm.slane %v174, 0
    %v182 = vunpack.c.l.b16 %v170
    %v183 = vunpack.c.l.b16 %v171
    %v184 = vunpack.c.l.b16 %v172
    %v185 = vunpack.c.l.b16 %v173
    %v186 = vpack.c.b16 %v183, %v182
    %v187 = vpack.c.b16 %v185, %v184
    %vm190 = vcmask 261120
    %v192 = vsel %vm190, %v169, 0
    %194 = vmatpush.bf16.msra.mxu0 0
    %195 = vmatpush.bf16.msra.mxu0 0
    %196 = vmatpush.bf16.msra.mxu0 0
    %197 = vmatpush.bf16.msra.mxu0 0
    %198 = vmatpush.bf16.msra.mxu0 0
    %199 = vmatpush.bf16.msra.mxu0 0
    %200 = vmatpush.bf16.msra.mxu0 %v187
    %201 = vmatpush.bf16.msra.mxu0 %v186
    %202 = vmatmul.bf16.gmra.mxu0 %v192
    %v203 = vpop.f32.mrf.mxu0
    %v204 = vadd.f32 %v176, %v203
    %v205 = vpop.f32.mrf.mxu0
    %206 = vdwg.mxu0
    %v208 = vrot.slane %v204, 1
    %v209 = vperm.slane %v204, 0
    %v210 = vperm.slane %v208, 0
    %v213 = vmul.f32 %v161, %v209
    %v214 = vmul.f32 %v162, %v210
    %v215 = vsel %vm190, %v213, 0.0
    %216 = vadd.xlane.f32.xlu0 %v215
    %v217 = vpop.xlane.xlu0 %216
    %v218 = vsel %vm190, %v214, 0.0
    %219 = vadd.xlane.f32.xlu0 %v218
    %v220 = vpop.xlane.xlu0 %219
    %v221 = vrot.slane %v217, 4
    %v222 = vmax.f32 %v217, %v221
    %v223 = vrot.slane %v222, 2
    %v224 = vmax.f32 %v222, %v223
    %v225 = vrot.slane %v224, 1
    %v226 = vmax.f32 %v224, %v225
    %v227 = vrot.slane %v220, 4
    %v228 = vmax.f32 %v220, %v227
    %v229 = vrot.slane %v228, 2
    %v230 = vmax.f32 %v228, %v229
    %v231 = vrot.slane %v230, 1
    %v232 = vmax.f32 %v230, %v231
    %v233 = vsub.f32 %v217, %v226
    %v234 = vsub.f32 %v220, %v232
    %v235 = vmul.f32 %v233, 1.442695
    %v236 = vpow.pop %v235
    %v237 = vmul.f32 %v234, 1.442695
    %v238 = vpow.pop %v237
    %v239 = vrot.slane %v236, 4
    %v240 = vadd.f32 %v236, %v239
    %v241 = vrot.slane %v240, 2
    %v242 = vadd.f32 %v240, %v241
    %v243 = vrot.slane %v242, 1
    %v244 = vadd.f32 %v242, %v243
    %v245 = vrot.slane %v238, 4
    %v246 = vadd.f32 %v238, %v245
    %v247 = vrot.slane %v246, 2
    %v248 = vadd.f32 %v246, %v247
    %v249 = vrot.slane %v248, 1
    %v250 = vadd.f32 %v248, %v249
    %v251 = vmul.f32 %v236, %v161
    %v252 = vmul.f32 %v238, %v162
    %v253 = vsel %vm190, %v251, 0.0
    %v254 = vrot.slane %v253, 4
    %v255 = vadd.f32 %v253, %v254
    %v256 = vrot.slane %v255, 2
    %v257 = vadd.f32 %v255, %v256
    %v258 = vrot.slane %v257, 1
    %v259 = vadd.f32 %v257, %v258
    %v260 = vsel %vm190, %v252, 0.0
    %v261 = vrot.slane %v260, 4
    %v262 = vadd.f32 %v260, %v261
    %v263 = vrot.slane %v262, 2
    %v264 = vadd.f32 %v262, %v263
    %v265 = vrot.slane %v264, 1
    %v266 = vadd.f32 %v264, %v265
    %v267 = vrcp.pop %v244
    %v268 = vrcp.pop %v250
    %v269 = vmul.f32 %v259, %v267
    %v270 = vmul.f32 %v266, %v268
    %v271 = vpack.c.bf16 %v269, %v269
    %v272 = vpack.c.bf16 %v270, %v270
    %v273 = vld [vmem:[#allocation8] sm:$0xf]
    %v274 = vld [vmem:[#allocation8 + $0x4] sm:$0xf]
    %v275 = vld [vmem:[#allocation8 + $0x8] sm:$0xf]
    %v276 = vld [vmem:[#allocation8 + $0xc] sm:$0xf]
    %v277 = vld [vmem:[%s8] sm:$0x1]
    %v279 = vperm.slane %v277, 0
    %v283 = vunpack.c.l.b16 %v271
    %v284 = vunpack.c.l.b16 %v272
    %vm285 = vcmask 1041409
    %v286 = vsel %vm285, %v284, %v283
    %v287 = vpack.c.b16 %v286, %v286
    %v292 = vunpack.c.l.b16 %v273
    %v293 = vunpack.c.l.b16 %v274
    %v294 = vunpack.c.l.b16 %v275
    %v295 = vunpack.c.l.b16 %v276
    %v296 = vpack.c.b16 %v293, %v292
    %v297 = vpack.c.b16 %v295, %v294
    %v301 = vsel %vm190, %v287, 0
    %303 = vmatpush.bf16.msra.mxu0 0
    %304 = vmatpush.bf16.msra.mxu0 0
    %305 = vmatpush.bf16.msra.mxu0 0
    %306 = vmatpush.bf16.msra.mxu0 0
    %307 = vmatpush.bf16.msra.mxu0 0
    %308 = vmatpush.bf16.msra.mxu0 0
    %309 = vmatpush.bf16.msra.mxu0 %v297
    %310 = vmatpush.bf16.msra.mxu0 %v296
    %311 = vmatmul.bf16.gmra.mxu0 %v301
    %v312 = vpop.f32.mrf.mxu0
    %v313 = vadd.f32 %v279, %v312
    %v314 = vpop.f32.mrf.mxu0
    %315 = vdwg.mxu0
    %317 = vset.pattern.permute.xlu0 0
    %318 = vperm.xlu0 %317, %v167
    %v319 = vpop.permute.xlu0 %318
    %v321 = vmul.f32 %v313, %v319
    %v322 = vpack.c.bf16 %v321, %v321
    %v323 = vld [vmem:[#allocation10] sm:$0xf]
    %v324 = vld [vmem:[#allocation10 + $0x4] sm:$0xf]
    %v325 = vld [vmem:[#allocation10 + $0x8] sm:$0xf]
    %v326 = vld [vmem:[#allocation10 + $0xc] sm:$0xf]
    %v327 = vld [vmem:[%s10] sm:$0x1]
    %v329 = vperm.slane %v327, 0
    %v335 = vunpack.c.l.b16 %v323
    %v336 = vunpack.c.l.b16 %v324
    %v337 = vunpack.c.l.b16 %v325
    %v338 = vunpack.c.l.b16 %v326
    %v339 = vpack.c.b16 %v336, %v335
    %v340 = vpack.c.b16 %v338, %v337
    %v344 = vsel %vm190, %v322, 0
    %346 = vmatpush.bf16.msra.mxu0 0
    %347 = vmatpush.bf16.msra.mxu0 0
    %348 = vmatpush.bf16.msra.mxu0 0
    %349 = vmatpush.bf16.msra.mxu0 0
    %350 = vmatpush.bf16.msra.mxu0 0
    %351 = vmatpush.bf16.msra.mxu0 0
    %352 = vmatpush.bf16.msra.mxu0 %v340
    %353 = vmatpush.bf16.msra.mxu0 %v339
    %354 = vmatmul.bf16.gmra.mxu0 %v344
    %v355 = vpop.f32.mrf.mxu0
    %v356 = vadd.f32 %v329, %v355
    %v357 = vpop.f32.mrf.mxu0
    %358 = vdwg.mxu0
    %v360 = vrot.slane %v356, 1
    %v361 = vperm.slane %v356, 0
    %v362 = vperm.slane %v360, 0
    %v365 = vmul.f32 %v163, %v361
    %v366 = vmul.f32 %v164, %v362
    %v367 = vsel %vm190, %v365, 0.0
    %368 = vadd.xlane.f32.xlu0 %v367
    %v369 = vpop.xlane.xlu0 %368
    %v370 = vsel %vm190, %v366, 0.0
    %371 = vadd.xlane.f32.xlu0 %v370
    %v372 = vpop.xlane.xlu0 %371
    %v373 = vrot.slane %v369, 4
    %v374 = vmax.f32 %v369, %v373
    %v375 = vrot.slane %v374, 2
    %v376 = vmax.f32 %v374, %v375
    %v377 = vrot.slane %v376, 1
    %v378 = vmax.f32 %v376, %v377
    %v379 = vrot.slane %v372, 4
    %v380 = vmax.f32 %v372, %v379
    %v381 = vrot.slane %v380, 2
    %v382 = vmax.f32 %v380, %v381
    %v383 = vrot.slane %v382, 1
    %v384 = vmax.f32 %v382, %v383
    %v385 = vsub.f32 %v369, %v378
    %v386 = vsub.f32 %v372, %v384
    %v387 = vmul.f32 %v385, 1.442695
    %v388 = vpow.pop %v387
    %v389 = vmul.f32 %v386, 1.442695
    %v390 = vpow.pop %v389
    %v391 = vrot.slane %v388, 4
    %v392 = vadd.f32 %v388, %v391
    %v393 = vrot.slane %v392, 2
    %v394 = vadd.f32 %v392, %v393
    %v395 = vrot.slane %v394, 1
    %v396 = vadd.f32 %v394, %v395
    %v397 = vrot.slane %v390, 4
    %v398 = vadd.f32 %v390, %v397
    %v399 = vrot.slane %v398, 2
    %v400 = vadd.f32 %v398, %v399
    %v401 = vrot.slane %v400, 1
    %v402 = vadd.f32 %v400, %v401
    %v403 = vmul.f32 %v388, %v163
    %v404 = vmul.f32 %v390, %v164
    %v405 = vsel %vm190, %v403, 0.0
    %v406 = vrot.slane %v405, 4
    %v407 = vadd.f32 %v405, %v406
    %v408 = vrot.slane %v407, 2
    %v409 = vadd.f32 %v407, %v408
    %v410 = vrot.slane %v409, 1
    %v411 = vadd.f32 %v409, %v410
    %v412 = vsel %vm190, %v404, 0.0
    %v413 = vrot.slane %v412, 4
    %v414 = vadd.f32 %v412, %v413
    %v415 = vrot.slane %v414, 2
    %v416 = vadd.f32 %v414, %v415
    %v417 = vrot.slane %v416, 1
    %v418 = vadd.f32 %v416, %v417
    %v419 = vrcp.pop %v396
    %v420 = vrcp.pop %v402
    %v421 = vmul.f32 %v411, %v419
    %v422 = vmul.f32 %v418, %v420
    %v423 = vpack.c.bf16 %v421, %v421
    %v424 = vpack.c.bf16 %v422, %v422
    %v425 = vld [vmem:[#allocation11] sm:$0xf]
    %v426 = vld [vmem:[#allocation11 + $0x4] sm:$0xf]
    %v427 = vld [vmem:[#allocation11 + $0x8] sm:$0xf]
    %v428 = vld [vmem:[#allocation11 + $0xc] sm:$0xf]
    %v429 = vld [vmem:[%s12] sm:$0x1]
    %v431 = vperm.slane %v429, 0
    %v435 = vunpack.c.l.b16 %v423
    %v436 = vunpack.c.l.b16 %v424
    %v437 = vsel %vm285, %v436, %v435
    %v438 = vpack.c.b16 %v437, %v437
    %v443 = vunpack.c.l.b16 %v425
    %v444 = vunpack.c.l.b16 %v426
    %v445 = vunpack.c.l.b16 %v427
    %v446 = vunpack.c.l.b16 %v428
    %v447 = vpack.c.b16 %v444, %v443
    %v448 = vpack.c.b16 %v446, %v445
    %v452 = vsel %vm190, %v438, 0
    %454 = vmatpush.bf16.msra.mxu0 0
    %455 = vmatpush.bf16.msra.mxu0 0
    %456 = vmatpush.bf16.msra.mxu0 0
    %457 = vmatpush.bf16.msra.mxu0 0
    %458 = vmatpush.bf16.msra.mxu0 0
    %459 = vmatpush.bf16.msra.mxu0 0
    %460 = vmatpush.bf16.msra.mxu0 %v448
    %461 = vmatpush.bf16.msra.mxu0 %v447
    %462 = vmatmul.bf16.gmra.mxu0 %v452
    %v463 = vpop.f32.mrf.mxu0
    %v464 = vadd.f32 %v431, %v463
    %v465 = vpop.f32.mrf.mxu0
    %466 = vdwg.mxu0
    %v467 = vpack.c.bf16 %v464, %v464
    %v468 = vld [vmem:[#allocation13] sm:$0xf]
    %v469 = vld [vmem:[#allocation13 + $0x4] sm:$0xf]
    %v470 = vld [vmem:[#allocation13 + $0x8] sm:$0xf]
    %v471 = vld [vmem:[#allocation13 + $0xc] sm:$0xf]
    %v472 = vld [vmem:[%s14] sm:$0x1]
    %v474 = vperm.slane %v472, 0
    %v480 = vunpack.c.l.b16 %v468
    %v481 = vunpack.c.l.b16 %v469
    %v482 = vunpack.c.l.b16 %v470
    %v483 = vunpack.c.l.b16 %v471
    %v484 = vpack.c.b16 %v481, %v480
    %v485 = vpack.c.b16 %v483, %v482
    %v489 = vsel %vm190, %v467, 0
    %491 = vmatpush.bf16.msra.mxu0 0
    %492 = vmatpush.bf16.msra.mxu0 0
    %493 = vmatpush.bf16.msra.mxu0 0
    %494 = vmatpush.bf16.msra.mxu0 0
    %495 = vmatpush.bf16.msra.mxu0 0
    %496 = vmatpush.bf16.msra.mxu0 0
    %497 = vmatpush.bf16.msra.mxu0 %v485
    %498 = vmatpush.bf16.msra.mxu0 %v484
    %499 = vmatmul.bf16.gmra.mxu0 %v489
    %v500 = vpop.f32.mrf.mxu0
    %v501 = vadd.f32 %v474, %v500
    %v502 = vpop.f32.mrf.mxu0
    %503 = vdwg.mxu0
    %v504 = vmax.f32 %v501, 0.0
    %vm505 = vcmask 254976
    %506 = vst.msk [vmem:[#allocation14] sm:$0x3] %vm505, %v504
    // Predicated region
    $region90: #{tpu_custom_call.1} parent=1 // pred_check
      _
    $region91: #{tpu_custom_call.1} parent=1 // pred_check_branch
      %508 = sbr.rel (0) target = $region93
    $region92: #{tpu_custom_call.1} parent=1 // pred_region
      %510 = vsyncadd [#allocation4], 0
      %s512 = sshll.u32 [#allocation14], 4
      %s513 = int_to_ptr.vmem [resolvable:$true] %s512
      %s514 = sshll.u32 %s15, 4
      %s515 = int_to_ptr.hbm [resolvable:$true] %s514
      %517 = dma.vmem_to_hbm [thread:$0]  %s513, 32, %s515, [#allocation4]
    $region93: #{tpu_custom_call.1} parent=1 // pred_fallthru
      _
    // Predicated region
    $region94: #{tpu_custom_call.1} parent=1 // pred_check
      _
    $region95: #{tpu_custom_call.1} parent=1 // pred_check_branch
      %519 = sbr.rel (0) target = $region97
    $region96: #{tpu_custom_call.1} parent=1 // pred_region
      %521 = dma.done [#allocation4], 32
    $region97: #{tpu_custom_call.1} parent=1 // pred_fallthru
      _
    %522 = vsyncpa [#allocation3], 1
    %523 = vsyncpa [#allocation6], 1
    %524 = vsyncpa [#allocation9], 1
    %525 = vsyncpa [#allocation12], 1
    %526 = vsyncpa [#allocation4], 1

// kernel: tpu_custom_call.1
$region0: #{tpu_custom_call.1}
  #allocation0 [shape = 'u32[]', space=smem, size = 0x4, offset = 0x4, fixed_abs, tag = 'smem constant byte address 0x4 - core index']
  #allocation1 [shape = 'u32[72,128]{1,0:T(1,128)}', space=vmem, size = 0x9000, scoped, tag = 'internal scratch']
  %s0 = inlined_call_operand.hbm [shape: f32[2,8,32], index: 0, kind: input, shape index: {}]
  %s1 = inlined_call_operand.hbm [shape: f32[2,8,32], index: 1, kind: input, shape index: {}]
  %s2 = inlined_call_operand.vmem [shape: f32[2,32], index: 2, kind: input, shape index: {}]
  %s3 = inlined_call_operand.vmem [shape: f32[2,1], index: 3, kind: input, shape index: {}]
  %s4 = inlined_call_operand.vmem [shape: f32[2,1], index: 4, kind: input, shape index: {}]
  %s5 = inlined_call_operand.hbm [shape: bf16[32,32], index: 5, kind: input, shape index: {}]
  %s6 = inlined_call_operand.vmem [shape: f32[1,32], index: 6, kind: input, shape index: {}]
  %s7 = inlined_call_operand.hbm [shape: bf16[32,32], index: 7, kind: input, shape index: {}]
  %s8 = inlined_call_operand.vmem [shape: f32[1,32], index: 8, kind: input, shape index: {}]
  %s9 = inlined_call_operand.hbm [shape: bf16[32,32], index: 9, kind: input, shape index: {}]
  %s10 = inlined_call_operand.vmem [shape: f32[1,32], index: 10, kind: input, shape index: {}]
  %s11 = inlined_call_operand.hbm [shape: bf16[32,32], index: 11, kind: input, shape index: {}]
  %s12 = inlined_call_operand.vmem [shape: f32[1,32], index: 12, kind: input, shape index: {}]
  %s13 = inlined_call_operand.hbm [shape: bf16[32,32], index: 13, kind: input, shape index: {}]
  %s14 = inlined_call_operand.vmem [shape: f32[1,32], index: 14, kind: input, shape index: {}]
  %s15 = inlined_call_operand.hbm [shape: f32[2,32], index: 15, kind: output, shape index: {}]
  %s16 = sld [smem:[#allocation0]]
  $region98: #{tpu_custom_call.1} parent=0
    _
  %s18 = ssub.s32 1, %s16
  %s19 = scalar_select 0, %s18, %s16
  $region1: #{tpu_custom_call.1} parent=0
    #allocation2 [shape = 'u8[8192]{0}', space=vmem, size = 0x2000, scoped, tag = 'input window, operand 0, single buffered']
    #allocation3 [shape = 's32[1]{0}', space=sflag, size = 0x4, scoped, tag = 'scoped memory for tpu_custom_call.1']
    #allocation4 [shape = 's32[1]{0}', space=sflag, size = 0x4, scoped, tag = 'scoped memory for tpu_custom_call.1']
    #allocation5 [shape = 'u8[8192]{0}', space=vmem, size = 0x2000, scoped, tag = 'input window, operand 1, single buffered']
    #allocation6 [shape = 's32[1]{0}', space=sflag, size = 0x4, scoped, tag = 'scoped memory for tpu_custom_call.1']
    #allocation7 [shape = 'u8[8192]{0}', space=vmem, size = 0x2000, scoped, tag = 'input window, operand 5, single buffered']
    #allocation8 [shape = 'u8[8192]{0}', space=vmem, size = 0x2000, scoped, tag = 'input window, operand 7, single buffered']
    #allocation9 [shape = 's32[1]{0}', space=sflag, size = 0x4, scoped, tag = 'scoped memory for tpu_custom_call.1']
    #allocation10 [shape = 'u8[8192]{0}', space=vmem, size = 0x2000, scoped, tag = 'input window, operand 9, single buffered']
    #allocation11 [shape = 'u8[8192]{0}', space=vmem, size = 0x2000, scoped, tag = 'input window, operand 11, single buffered']
    #allocation12 [shape = 's32[1]{0}', space=sflag, size = 0x4, scoped, tag = 'scoped memory for tpu_custom_call.1']
    #allocation13 [shape = 'u8[8192]{0}', space=vmem, size = 0x2000, scoped, tag = 'input window, operand 13, single buffered']
    #allocation14 [shape = 'u8[1024]{0}', space=vmem, size = 0x400, scoped, tag = 'output window, operand 0, single buffered']
    %20 = vsyncpa [#allocation3], 0
    %21 = vsyncpa [#allocation6], 0
    %22 = vsyncpa [#allocation9], 0
    %23 = vsyncpa [#allocation12], 0
    %24 = vsyncpa [#allocation4], 0
    // Predicated region
    $region2: #{tpu_custom_call.1} parent=1 // pred_check
      _
    $region3: #{tpu_custom_call.1} parent=1 // pred_check_branch
      %26 = sbr.rel (0) target = $region5
    $region4: #{tpu_custom_call.1} parent=1 // pred_region
      %28 = vsyncadd [#allocation3], 0
      %s29 = sshll.u32 %s0, 4
      %s30 = int_to_ptr.hbm [resolvable:$true] %s29
      %s31 = sshll.u32 [#allocation2], 4
      %s32 = int_to_ptr.vmem [resolvable:$true] %s31
      %37 = dma.hbm_to_vmem [thread:$0]  %s30, 256, %s32, [#allocation3], 128, 128, 8
    $region5: #{tpu_custom_call.1} parent=1 // pred_fallthru
      _
    // Predicated region
    $region6: #{tpu_custom_call.1} parent=1 // pred_check
      _
    $region7: #{tpu_custom_call.1} parent=1 // pred_check_branch
      %39 = sbr.rel (0) target = $region9
    $region8: #{tpu_custom_call.1} parent=1 // pred_region
      %41 = vsyncadd [#allocation6], 0
      %s42 = sshll.u32 %s1, 4
      %s43 = int_to_ptr.hbm [resolvable:$true] %s42
      %s44 = sshll.u32 [#allocation5], 4
      %s45 = int_to_ptr.vmem [resolvable:$true] %s44
      %50 = dma.hbm_to_vmem [thread:$0]  %s43, 256, %s45, [#allocation6], 128, 128, 8
    $region9: #{tpu_custom_call.1} parent=1 // pred_fallthru
      _
    // Predicated region
    $region10: #{tpu_custom_call.1} parent=1 // pred_check
      _
    $region11: #{tpu_custom_call.1} parent=1 // pred_check_branch
      %52 = sbr.rel (0) target = $region13
    $region12: #{tpu_custom_call.1} parent=1 // pred_region
      _
    $region13: #{tpu_custom_call.1} parent=1 // pred_fallthru
      _
    // Predicated region
    $region14: #{tpu_custom_call.1} parent=1 // pred_check
      _
    $region15: #{tpu_custom_call.1} parent=1 // pred_check_branch
      %54 = sbr.rel (0) target = $region17
    $region16: #{tpu_custom_call.1} parent=1 // pred_region
      _
    $region17: #{tpu_custom_call.1} parent=1 // pred_fallthru
      _
    // Predicated region
    $region18: #{tpu_custom_call.1} parent=1 // pred_check
      _
    $region19: #{tpu_custom_call.1} parent=1 // pred_check_branch
      %56 = sbr.rel (0) target = $region21
    $region20: #{tpu_custom_call.1} parent=1 // pred_region
      _
    $region21: #{tpu_custom_call.1} parent=1 // pred_fallthru
      _
    // Predicated region
    $region22: #{tpu_custom_call.1} parent=1 // pred_check
      _
    $region23: #{tpu_custom_call.1} parent=1 // pred_check_branch
      %58 = sbr.rel (0) target = $region25
    $region24: #{tpu_custom_call.1} parent=1 // pred_region
      %60 = vsyncadd [#allocation6], 0
      %s61 = sshll.u32 %s5, 4
      %s62 = int_to_ptr.hbm [resolvable:$true] %s61
      %s63 = sshll.u32 [#allocation7], 4
      %s64 = int_to_ptr.vmem [resolvable:$true] %s63
      %69 = dma.hbm_to_vmem [thread:$0]  %s62, 256, %s64, [#allocation6], 64, 64, 4
    $region25: #{tpu_custom_call.1} parent=1 // pred_fallthru
      _
    // Predicated region
    $region26: #{tpu_custom_call.1} parent=1 // pred_check
      _
    $region27: #{tpu_custom_call.1} parent=1 // pred_check_branch
      %71 = sbr.rel (0) target = $region29
    $region28: #{tpu_custom_call.1} parent=1 // pred_region
      _
    $region29: #{tpu_custom_call.1} parent=1 // pred_fallthru
      _
    // Predicated region
    $region30: #{tpu_custom_call.1} parent=1 // pred_check
      _
    $region31: #{tpu_custom_call.1} parent=1 // pred_check_branch
      %73 = sbr.rel (0) target = $region33
    $region32: #{tpu_custom_call.1} parent=1 // pred_region
      %75 = vsyncadd [#allocation9], 0
      %s76 = sshll.u32 %s7, 4
      %s77 = int_to_ptr.hbm [resolvable:$true] %s76
      %s78 = sshll.u32 [#allocation8], 4
      %s79 = int_to_ptr.vmem [resolvable:$true] %s78
      %84 = dma.hbm_to_vmem [thread:$0]  %s77, 256, %s79, [#allocation9], 64, 64, 4
    $region33: #{tpu_custom_call.1} parent=1 // pred_fallthru
      _
    // Predicated region
    $region34: #{tpu_custom_call.1} parent=1 // pred_check
      _
    $region35: #{tpu_custom_call.1} parent=1 // pred_check_branch
      %86 = sbr.rel (0) target = $region37
    $region36: #{tpu_custom_call.1} parent=1 // pred_region
      _
    $region37: #{tpu_custom_call.1} parent=1 // pred_fallthru
      _
    // Predicated region
    $region38: #{tpu_custom_call.1} parent=1 // pred_check
      _
    $region39: #{tpu_custom_call.1} parent=1 // pred_check_branch
      %88 = sbr.rel (0) target = $region41
    $region40: #{tpu_custom_call.1} parent=1 // pred_region
      %90 = vsyncadd [#allocation9], 0
      %s91 = sshll.u32 %s9, 4
      %s92 = int_to_ptr.hbm [resolvable:$true] %s91
      %s93 = sshll.u32 [#allocation10], 4
      %s94 = int_to_ptr.vmem [resolvable:$true] %s93
      %99 = dma.hbm_to_vmem [thread:$0]  %s92, 256, %s94, [#allocation9], 64, 64, 4
    $region41: #{tpu_custom_call.1} parent=1 // pred_fallthru
      _
    // Predicated region
    $region42: #{tpu_custom_call.1} parent=1 // pred_check
      _
    $region43: #{tpu_custom_call.1} parent=1 // pred_check_branch
      %101 = sbr.rel (0) target = $region45
    $region44: #{tpu_custom_call.1} parent=1 // pred_region
      _
    $region45: #{tpu_custom_call.1} parent=1 // pred_fallthru
      _
    // Predicated region
    $region46: #{tpu_custom_call.1} parent=1 // pred_check
      _
    $region47: #{tpu_custom_call.1} parent=1 // pred_check_branch
      %103 = sbr.rel (0) target = $region49
    $region48: #{tpu_custom_call.1} parent=1 // pred_region
      %105 = vsyncadd [#allocation12], 0
      %s106 = sshll.u32 %s11, 4
      %s107 = int_to_ptr.hbm [resolvable:$true] %s106
      %s108 = sshll.u32 [#allocation11], 4
      %s109 = int_to_ptr.vmem [resolvable:$true] %s108
      %114 = dma.hbm_to_vmem [thread:$0]  %s107, 256, %s109, [#allocation12], 64, 64, 4
    $region49: #{tpu_custom_call.1} parent=1 // pred_fallthru
      _
    // Predicated region
    $region50: #{tpu_custom_call.1} parent=1 // pred_check
      _
    $region51: #{tpu_custom_call.1} parent=1 // pred_check_branch
      %116 = sbr.rel (0) target = $region53
    $region52: #{tpu_custom_call.1} parent=1 // pred_region
      _
    $region53: #{tpu_custom_call.1} parent=1 // pred_fallthru
      _
    // Predicated region
    $region54: #{tpu_custom_call.1} parent=1 // pred_check
      _
    $region55: #{tpu_custom_call.1} parent=1 // pred_check_branch
      %118 = sbr.rel (0) target = $region57
    $region56: #{tpu_custom_call.1} parent=1 // pred_region
      %120 = vsyncadd [#allocation12], 0
      %s121 = sshll.u32 %s13, 4
      %s122 = int_to_ptr.hbm [resolvable:$true] %s121
      %s123 = sshll.u32 [#allocation13], 4
      %s124 = int_to_ptr.vmem [resolvable:$true] %s123
      %129 = dma.hbm_to_vmem [thread:$0]  %s122, 256, %s124, [#allocation12], 64, 64, 4
    $region57: #{tpu_custom_call.1} parent=1 // pred_fallthru
      _
    // Predicated region
    $region58: #{tpu_custom_call.1} parent=1 // pred_check
      _
    $region59: #{tpu_custom_call.1} parent=1 // pred_check_branch
      %131 = sbr.rel (0) target = $region61
    $region60: #{tpu_custom_call.1} parent=1 // pred_region
      _
    $region61: #{tpu_custom_call.1} parent=1 // pred_fallthru
      _
    // Predicated region
    $region62: #{tpu_custom_call.1} parent=1 // pred_check
      _
    $region63: #{tpu_custom_call.1} parent=1 // pred_check_branch
      %133 = sbr.rel (0) target = $region65
    $region64: #{tpu_custom_call.1} parent=1 // pred_region
      %135 = dma.done [#allocation3], 256
    $region65: #{tpu_custom_call.1} parent=1 // pred_fallthru
      _
    // Predicated region
    $region66: #{tpu_custom_call.1} parent=1 // pred_check
      _
    $region67: #{tpu_custom_call.1} parent=1 // pred_check_branch
      %137 = sbr.rel (0) target = $region69
    $region68: #{tpu_custom_call.1} parent=1 // pred_region
      %139 = dma.done [#allocation6], 256
    $region69: #{tpu_custom_call.1} parent=1 // pred_fallthru
      _
    // Predicated region
    $region70: #{tpu_custom_call.1} parent=1 // pred_check
      _
    $region71: #{tpu_custom_call.1} parent=1 // pred_check_branch
      %141 = sbr.rel (0) target = $region73
    $region72: #{tpu_custom_call.1} parent=1 // pred_region
      %143 = dma.done [#allocation6], 256
    $region73: #{tpu_custom_call.1} parent=1 // pred_fallthru
      _
    // Predicated region
    $region74: #{tpu_custom_call.1} parent=1 // pred_check
      _
    $region75: #{tpu_custom_call.1} parent=1 // pred_check_branch
      %145 = sbr.rel (0) target = $region77
    $region76: #{tpu_custom_call.1} parent=1 // pred_region
      %147 = dma.done [#allocation9], 256
    $region77: #{tpu_custom_call.1} parent=1 // pred_fallthru
      _
    // Predicated region
    $region78: #{tpu_custom_call.1} parent=1 // pred_check
      _
    $region79: #{tpu_custom_call.1} parent=1 // pred_check_branch
      %149 = sbr.rel (0) target = $region81
    $region80: #{tpu_custom_call.1} parent=1 // pred_region
      %151 = dma.done [#allocation9], 256
    $region81: #{tpu_custom_call.1} parent=1 // pred_fallthru
      _
    // Predicated region
    $region82: #{tpu_custom_call.1} parent=1 // pred_check
      _
    $region83: #{tpu_custom_call.1} parent=1 // pred_check_branch
      %153 = sbr.rel (0) target = $region85
    $region84: #{tpu_custom_call.1} parent=1 // pred_region
      %155 = dma.done [#allocation12], 256
    $region85: #{tpu_custom_call.1} parent=1 // pred_fallthru
      _
    // Predicated region
    $region86: #{tpu_custom_call.1} parent=1 // pred_check
      _
    $region87: #{tpu_custom_call.1} parent=1 // pred_check_branch
      %157 = sbr.rel (0) target = $region89
    $region88: #{tpu_custom_call.1} parent=1 // pred_region
      %159 = dma.done [#allocation12], 256
    $region89: #{tpu_custom_call.1} parent=1 // pred_fallthru
      _
    %v161 = vld [vmem:[#allocation2] sm:$0xff]
    %v162 = vld [vmem:[#allocation2 + $0x8] sm:$0xff]
    %v163 = vld [vmem:[#allocation5] sm:$0xff]
    %v164 = vld [vmem:[#allocation5 + $0x8] sm:$0xff]
    %v165 = vld [vmem:[%s3] sm:$0x3]
    %v166 = vld [vmem:[%s4] sm:$0x3]
    %v167 = vmul.f32 %v165, %v166
    %v168 = vld [vmem:[%s2] sm:$0x3]
    %v169 = vpack.c.bf16 %v168, %v168
    %v170 = vld [vmem:[#allocation7] sm:$0xf]
    %v171 = vld [vmem:[#allocation7 + $0x4] sm:$0xf]
    %v172 = vld [vmem:[#allocation7 + $0x8] sm:$0xf]
    %v173 = vld [vmem:[#allocation7 + $0xc] sm:$0xf]
    %v174 = vld [vmem:[%s6] sm:$0x1]
    %v176 = vperm.slane %v174, 0
    %v182 = vunpack.c.l.b16 %v170
    %v183 = vunpack.c.l.b16 %v171
    %v184 = vunpack.c.l.b16 %v172
    %v185 = vunpack.c.l.b16 %v173
    %v186 = vpack.c.b16 %v183, %v182
    %v187 = vpack.c.b16 %v185, %v184
    %vm190 = vcmask 261120
    %v192 = vsel %vm190, %v169, 0
    %194 = vmatpush.bf16.msra.mxu0 0
    %195 = vmatpush.bf16.msra.mxu0 0
    %196 = vmatpush.bf16.msra.mxu0 0
    %197 = vmatpush.bf16.msra.mxu0 0
    %198 = vmatpush.bf16.msra.mxu0 0
    %199 = vmatpush.bf16.msra.mxu0 0
    %200 = vmatpush.bf16.msra.mxu0 %v187
    %201 = vmatpush.bf16.msra.mxu0 %v186
    %202 = vmatmul.bf16.gmra.mxu0 %v192
    %v203 = vpop.f32.mrf.mxu0
    %v204 = vadd.f32 %v176, %v203
    %v205 = vpop.f32.mrf.mxu0
    %206 = vdwg.mxu0
    %v208 = vrot.slane %v204, 1
    %v209 = vperm.slane %v204, 0
    %v210 = vperm.slane %v208, 0
    %v213 = vmul.f32 %v161, %v209
    %v214 = vmul.f32 %v162, %v210
    %v215 = vsel %vm190, %v213, 0.0
    %216 = vadd.xlane.f32.xlu0 %v215
    %v217 = vpop.xlane.xlu0 %216
    %v218 = vsel %vm190, %v214, 0.0
    %219 = vadd.xlane.f32.xlu0 %v218
    %v220 = vpop.xlane.xlu0 %219
    %v221 = vrot.slane %v217, 4
    %v222 = vmax.f32 %v217, %v221
    %v223 = vrot.slane %v222, 2
    %v224 = vmax.f32 %v222, %v223
    %v225 = vrot.slane %v224, 1
    %v226 = vmax.f32 %v224, %v225
    %v227 = vrot.slane %v220, 4
    %v228 = vmax.f32 %v220, %v227
    %v229 = vrot.slane %v228, 2
    %v230 = vmax.f32 %v228, %v229
    %v231 = vrot.slane %v230, 1
    %v232 = vmax.f32 %v230, %v231
    %v233 = vsub.f32 %v217, %v226
    %v234 = vsub.f32 %v220, %v232
    %v235 = vmul.f32 %v233, 1.442695
    %v236 = vpow.pop %v235
    %v237 = vmul.f32 %v234, 1.442695
    %v238 = vpow.pop %v237
    %v239 = vrot.slane %v236, 4
    %v240 = vadd.f32 %v236, %v239
    %v241 = vrot.slane %v240, 2
    %v242 = vadd.f32 %v240, %v241
    %v243 = vrot.slane %v242, 1
    %v244 = vadd.f32 %v242, %v243
    %v245 = vrot.slane %v238, 4
    %v246 = vadd.f32 %v238, %v245
    %v247 = vrot.slane %v246, 2
    %v248 = vadd.f32 %v246, %v247
    %v249 = vrot.slane %v248, 1
    %v250 = vadd.f32 %v248, %v249
    %v251 = vmul.f32 %v236, %v161
    %v252 = vmul.f32 %v238, %v162
    %v253 = vsel %vm190, %v251, 0.0
    %v254 = vrot.slane %v253, 4
    %v255 = vadd.f32 %v253, %v254
    %v256 = vrot.slane %v255, 2
    %v257 = vadd.f32 %v255, %v256
    %v258 = vrot.slane %v257, 1
    %v259 = vadd.f32 %v257, %v258
    %v260 = vsel %vm190, %v252, 0.0
    %v261 = vrot.slane %v260, 4
    %v262 = vadd.f32 %v260, %v261
    %v263 = vrot.slane %v262, 2
    %v264 = vadd.f32 %v262, %v263
    %v265 = vrot.slane %v264, 1
    %v266 = vadd.f32 %v264, %v265
    %v267 = vrcp.pop %v244
    %v268 = vrcp.pop %v250
    %v269 = vmul.f32 %v259, %v267
    %v270 = vmul.f32 %v266, %v268
    %v271 = vpack.c.bf16 %v269, %v269
    %v272 = vpack.c.bf16 %v270, %v270
    %v273 = vld [vmem:[#allocation8] sm:$0xf]
    %v274 = vld [vmem:[#allocation8 + $0x4] sm:$0xf]
    %v275 = vld [vmem:[#allocation8 + $0x8] sm:$0xf]
    %v276 = vld [vmem:[#allocation8 + $0xc] sm:$0xf]
    %v277 = vld [vmem:[%s8] sm:$0x1]
    %v279 = vperm.slane %v277, 0
    %v283 = vunpack.c.l.b16 %v271
    %v284 = vunpack.c.l.b16 %v272
    %vm285 = vcmask 1041409
    %v286 = vsel %vm285, %v284, %v283
    %v287 = vpack.c.b16 %v286, %v286
    %v292 = vunpack.c.l.b16 %v273
    %v293 = vunpack.c.l.b16 %v274
    %v294 = vunpack.c.l.b16 %v275
    %v295 = vunpack.c.l.b16 %v276
    %v296 = vpack.c.b16 %v293, %v292
    %v297 = vpack.c.b16 %v295, %v294
    %v301 = vsel %vm190, %v287, 0
    %303 = vmatpush.bf16.msra.mxu0 0
    %304 = vmatpush.bf16.msra.mxu0 0
    %305 = vmatpush.bf16.msra.mxu0 0
    %306 = vmatpush.bf16.msra.mxu0 0
    %307 = vmatpush.bf16.msra.mxu0 0
    %308 = vmatpush.bf16.msra.mxu0 0
    %309 = vmatpush.bf16.msra.mxu0 %v297
    %310 = vmatpush.bf16.msra.mxu0 %v296
    %311 = vmatmul.bf16.gmra.mxu0 %v301
    %v312 = vpop.f32.mrf.mxu0
    %v313 = vadd.f32 %v279, %v312
    %v314 = vpop.f32.mrf.mxu0
    %315 = vdwg.mxu0
    %317 = vset.pattern.permute.xlu0 0
    %318 = vperm.xlu0 %317, %v167
    %v319 = vpop.permute.xlu0 %318
    %v321 = vmul.f32 %v313, %v319
    %v322 = vpack.c.bf16 %v321, %v321
    %v323 = vld [vmem:[#allocation10] sm:$0xf]
    %v324 = vld [vmem:[#allocation10 + $0x4] sm:$0xf]
    %v325 = vld [vmem:[#allocation10 + $0x8] sm:$0xf]
    %v326 = vld [vmem:[#allocation10 + $0xc] sm:$0xf]
    %v327 = vld [vmem:[%s10] sm:$0x1]
    %v329 = vperm.slane %v327, 0
    %v335 = vunpack.c.l.b16 %v323
    %v336 = vunpack.c.l.b16 %v324
    %v337 = vunpack.c.l.b16 %v325
    %v338 = vunpack.c.l.b16 %v326
    %v339 = vpack.c.b16 %v336, %v335
    %v340 = vpack.c.b16 %v338, %v337
    %v344 = vsel %vm190, %v322, 0
    %346 = vmatpush.bf16.msra.mxu0 0
    %347 = vmatpush.bf16.msra.mxu0 0
    %348 = vmatpush.bf16.msra.mxu0 0
    %349 = vmatpush.bf16.msra.mxu0 0
    %350 = vmatpush.bf16.msra.mxu0 0
    %351 = vmatpush.bf16.msra.mxu0 0
    %352 = vmatpush.bf16.msra.mxu0 %v340
    %353 = vmatpush.bf16.msra.mxu0 %v339
    %354 = vmatmul.bf16.gmra.mxu0 %v344
    %v355 = vpop.f32.mrf.mxu0
    %v356 = vadd.f32 %v329, %v355
    %v357 = vpop.f32.mrf.mxu0
    %358 = vdwg.mxu0
    %v360 = vrot.slane %v356, 1
    %v361 = vperm.slane %v356, 0
    %v362 = vperm.slane %v360, 0
    %v365 = vmul.f32 %v163, %v361
    %v366 = vmul.f32 %v164, %v362
    %v367 = vsel %vm190, %v365, 0.0
    %368 = vadd.xlane.f32.xlu0 %v367
    %v369 = vpop.xlane.xlu0 %368
    %v370 = vsel %vm190, %v366, 0.0
    %371 = vadd.xlane.f32.xlu0 %v370
    %v372 = vpop.xlane.xlu0 %371
    %v373 = vrot.slane %v369, 4
    %v374 = vmax.f32 %v369, %v373
    %v375 = vrot.slane %v374, 2
    %v376 = vmax.f32 %v374, %v375
    %v377 = vrot.slane %v376, 1
    %v378 = vmax.f32 %v376, %v377
    %v379 = vrot.slane %v372, 4
    %v380 = vmax.f32 %v372, %v379
    %v381 = vrot.slane %v380, 2
    %v382 = vmax.f32 %v380, %v381
    %v383 = vrot.slane %v382, 1
    %v384 = vmax.f32 %v382, %v383
    %v385 = vsub.f32 %v369, %v378
    %v386 = vsub.f32 %v372, %v384
    %v387 = vmul.f32 %v385, 1.442695
    %v388 = vpow.pop %v387
    %v389 = vmul.f32 %v386, 1.442695
    %v390 = vpow.pop %v389
    %v391 = vrot.slane %v388, 4
    %v392 = vadd.f32 %v388, %v391
    %v393 = vrot.slane %v392, 2
    %v394 = vadd.f32 %v392, %v393
    %v395 = vrot.slane %v394, 1
    %v396 = vadd.f32 %v394, %v395
    %v397 = vrot.slane %v390, 4
    %v398 = vadd.f32 %v390, %v397
    %v399 = vrot.slane %v398, 2
    %v400 = vadd.f32 %v398, %v399
    %v401 = vrot.slane %v400, 1
    %v402 = vadd.f32 %v400, %v401
    %v403 = vmul.f32 %v388, %v163
    %v404 = vmul.f32 %v390, %v164
    %v405 = vsel %vm190, %v403, 0.0
    %v406 = vrot.slane %v405, 4
    %v407 = vadd.f32 %v405, %v406
    %v408 = vrot.slane %v407, 2
    %v409 = vadd.f32 %v407, %v408
    %v410 = vrot.slane %v409, 1
    %v411 = vadd.f32 %v409, %v410
    %v412 = vsel %vm190, %v404, 0.0
    %v413 = vrot.slane %v412, 4
    %v414 = vadd.f32 %v412, %v413
    %v415 = vrot.slane %v414, 2
    %v416 = vadd.f32 %v414, %v415
    %v417 = vrot.slane %v416, 1
    %v418 = vadd.f32 %v416, %v417
    %v419 = vrcp.pop %v396
    %v420 = vrcp.pop %v402
    %v421 = vmul.f32 %v411, %v419
    %v422 = vmul.f32 %v418, %v420
    %v423 = vpack.c.bf16 %v421, %v421
    %v424 = vpack.c.bf16 %v422, %v422
    %v425 = vld [vmem:[#allocation11] sm:$0xf]
    %v426 = vld [vmem:[#allocation11 + $0x4] sm:$0xf]
    %v427 = vld [vmem:[#allocation11 + $0x8] sm:$0xf]
    %v428 = vld [vmem:[#allocation11 + $0xc] sm:$0xf]
    %v429 = vld [vmem:[%s12] sm:$0x1]
    %v431 = vperm.slane %v429, 0
    %v435 = vunpack.c.l.b16 %v423
    %v436 = vunpack.c.l.b16 %v424
    %v437 = vsel %vm285, %v436, %v435
    %v438 = vpack.c.b16 %v437, %v437
    %v443 = vunpack.c.l.b16 %v425
    %v444 = vunpack.c.l.b16 %v426
    %v445 = vunpack.c.l.b16 %v427
    %v446 = vunpack.c.l.b16 %v428
    %v447 = vpack.c.b16 %v444, %v443
    %v448 = vpack.c.b16 %v446, %v445
    %v452 = vsel %vm190, %v438, 0
    %454 = vmatpush.bf16.msra.mxu0 0
    %455 = vmatpush.bf16.msra.mxu0 0
    %456 = vmatpush.bf16.msra.mxu0 0
    %457 = vmatpush.bf16.msra.mxu0 0
    %458 = vmatpush.bf16.msra.mxu0 0
    %459 = vmatpush.bf16.msra.mxu0 0
    %460 = vmatpush.bf16.msra.mxu0 %v448
    %461 = vmatpush.bf16.msra.mxu0 %v447
    %462 = vmatmul.bf16.gmra.mxu0 %v452
    %v463 = vpop.f32.mrf.mxu0
    %v464 = vadd.f32 %v431, %v463
    %v465 = vpop.f32.mrf.mxu0
    %466 = vdwg.mxu0
    %v467 = vpack.c.bf16 %v464, %v464
    %v468 = vld [vmem:[#allocation13] sm:$0xf]
    %v469 = vld [vmem:[#allocation13 + $0x4] sm:$0xf]
    %v470 = vld [vmem:[#allocation13 + $0x8] sm:$0xf]
    %v471 = vld [vmem:[#allocation13 + $0xc] sm:$0xf]
    %v472 = vld [vmem:[%s14] sm:$0x1]
    %v474 = vperm.slane %v472, 0
    %v480 = vunpack.c.l.b16 %v468
    %v481 = vunpack.c.l.b16 %v469
    %v482 = vunpack.c.l.b16 %v470
    %v483 = vunpack.c.l.b16 %v471
    %v484 = vpack.c.b16 %v481, %v480
    %v485 = vpack.c.b16 %v483, %v482
    %v489 = vsel %vm190, %v467, 0
    %491 = vmatpush.bf16.msra.mxu0 0
    %492 = vmatpush.bf16.msra.mxu0 0
    %493 = vmatpush.bf16.msra.mxu0 0
    %494 = vmatpush.bf16.msra.mxu0 0
    %495 = vmatpush.bf16.msra.mxu0 0
    %496 = vmatpush.bf16.msra.mxu0 0
    %497 = vmatpush.bf16.msra.mxu0 %v485
    %498 = vmatpush.bf16.msra.mxu0 %v484
    %499 = vmatmul.bf16.gmra.mxu0 %v489
    %v500 = vpop.f32.mrf.mxu0
    %v501 = vadd.f32 %v474, %v500
    %v502 = vpop.f32.mrf.mxu0
    %503 = vdwg.mxu0
    %v504 = vmax.f32 %v501, 0.0
    %vm505 = vcmask 254976
    %506 = vst.msk [vmem:[#allocation14] sm:$0x3] %vm505, %v504
    // Predicated region
    $region90: #{tpu_custom_call.1} parent=1 // pred_check
      _
    $region91: #{tpu_custom_call.1} parent=1 // pred_check_branch
      %508 = sbr.rel (0) target = $region93
    $region92: #{tpu_custom_call.1} parent=1 // pred_region
      %510 = vsyncadd [#allocation4], 0
      %s512 = sshll.u32 [#allocation14], 4
      %s513 = int_to_ptr.vmem [resolvable:$true] %s512
      %s514 = sshll.u32 %s15, 4
      %s515 = int_to_ptr.hbm [resolvable:$true] %s514
      %517 = dma.vmem_to_hbm [thread:$0]  %s513, 32, %s515, [#allocation4]
    $region93: #{tpu_custom_call.1} parent=1 // pred_fallthru
      _
    // Predicated region
    $region94: #{tpu_custom_call.1} parent=1 // pred_check
      _
    $region95: #{tpu_custom_call.1} parent=1 // pred_check_branch
      %519 = sbr.rel (0) target = $region97
    $region96: #{tpu_custom_call.1} parent=1 // pred_region
      %521 = dma.done [#allocation4], 32
    $region97: #{tpu_custom_call.1} parent=1 // pred_fallthru
      _
    %522 = vsyncpa [#allocation3], 1
    %523 = vsyncpa [#allocation6], 1
    %524 = vsyncpa [#allocation9], 1
    %525 = vsyncpa [#allocation12], 1
    %526 = vsyncpa [#allocation4], 1

</llo_original>
